<compile_context>
chip_gen: v7x
topology: tpu7x:2x2x1
jax: 0.10.0
libtpu: 0.0.40
codegen_flags: <defaults>
</compile_context>

<pallas_src>
import functools

import numpy as np
import jax
import jax.numpy as jnp
from jax.experimental import pallas as pl
from jax.experimental.pallas import tpu as pltpu


# ----------------------------------------------------------------------------- kernel
def _gru_pair_kernel(x_ref, xnum_ref, wih_ref, whh_ref, bih_ref, bhh_ref, out_ref):
    """One grid step == one GRU branch.

    x_ref   : (T*B, E)  time-major, flattened (row block t*B:(t+1)*B is timestep t)
    xnum_ref: (B, 1)    int32 index of the timestep whose hidden state to keep
    wih_ref : (E, 3H)   fused input weights, columns [r | z | n] (PyTorch gate order)
    whh_ref : (H, 3H)   fused hidden weights
    bih_ref : (1, 3H)   input bias
    bhh_ref : (1, 3H)   hidden bias
    out_ref : (B, H)    gathered hidden states
    """
    B, H = out_ref.shape
    TB, _ = x_ref.shape
    T = TB // B

    # Input projection for ALL timesteps in one MXU-friendly matmul; fold b_ih once.
    gi_all = (
        jnp.dot(x_ref[...], wih_ref[...], preferred_element_type=jnp.float32)
        + bih_ref[...]
    )  # (T*B, 3H)

    whh = whh_ref[...]          # (H, 3H)
    bhh = bhh_ref[...]          # (1, 3H)
    xnum = xnum_ref[...]        # (B, 1) int32

    h = jnp.zeros((B, H), jnp.float32)
    out = jnp.zeros((B, H), jnp.float32)

    # T is a small static trip count -> fully unroll so the scheduler can overlap
    # the EUP sigmoid/tanh of step t with the MXU push of step t+1.
    for t in range(T):
        gi = gi_all[t * B:(t + 1) * B, :]                       # (B, 3H) static slice
        gh = jnp.dot(h, whh, preferred_element_type=jnp.float32) + bhh  # (B, 3H)
        s = gi + gh
        r = jax.nn.sigmoid(s[:, 0:H])
        z = jax.nn.sigmoid(s[:, H:2 * H])
        n = jnp.tanh(gi[:, 2 * H:3 * H] + r * gh[:, 2 * H:3 * H])
        h = (1.0 - z) * n + z * h
        # keep the hidden state of the requested timestep for each row
        out = jnp.where(xnum == t, h, out)

    out_ref[...] = out


# ----------------------------------------------------------------------------- jitted core
@jax.jit
def _itemnn_core(params, xl_ids, nl, xs_ids, ns):
    """Static-shape core: embedding lookup + one pallas_call covering both branches."""
    emb = params["embedding"]
    B, T = xl_ids.shape
    E = emb.shape[1]
    H = params["gru_long"]["w_hh"].shape[0]

    def prep(ids):
        e = jnp.take(emb, ids, axis=0)            # (B, T, E)
        e = jnp.transpose(e, (1, 0, 2))           # time-major (T, B, E)
        return e.reshape(T * B, E).astype(jnp.float32)

    x_stacked = jnp.stack([prep(xl_ids), prep(xs_ids)], axis=0)                 # (2, T*B, E)
    xnum_stacked = jnp.stack([nl, ns], axis=0).astype(jnp.int32)[..., None]     # (2, B, 1)

    gl, gs = params["gru_long"], params["gru_short"]
    wih = jnp.stack([gl["w_ih"], gs["w_ih"]], axis=0)   # (2, E, 3H)
    whh = jnp.stack([gl["w_hh"], gs["w_hh"]], axis=0)   # (2, H, 3H)
    bih = jnp.stack([gl["b_ih"], gs["b_ih"]], axis=0)   # (2, 1, 3H)
    bhh = jnp.stack([gl["b_hh"], gs["b_hh"]], axis=0)   # (2, 1, 3H)

    out = pl.pallas_call(
        _gru_pair_kernel,
        out_shape=jax.ShapeDtypeStruct((2, B, H), jnp.float32),
        grid=(2,),
        in_specs=[
            pl.BlockSpec((None, T * B, E), lambda i: (i, 0, 0)),
            pl.BlockSpec((None, B, 1), lambda i: (i, 0, 0)),
            pl.BlockSpec((None, E, 3 * H), lambda i: (i, 0, 0)),
            pl.BlockSpec((None, H, 3 * H), lambda i: (i, 0, 0)),
            pl.BlockSpec((None, 1, 3 * H), lambda i: (i, 0, 0)),
            pl.BlockSpec((None, 1, 3 * H), lambda i: (i, 0, 0)),
        ],
        out_specs=pl.BlockSpec((None, B, H), lambda i: (i, 0, 0)),
        compiler_params=pltpu.CompilerParams(dimension_semantics=("parallel",)),
    )(x_stacked, xnum_stacked, wih, whh, bih, bhh)

    return out[0], out[1]


# ----------------------------------------------------------------------------- params
def init_gru_params(key, embedding_dim, hidden_size):
    """PyTorch nn.GRU-style uniform(-1/sqrt(H), 1/sqrt(H)) init; fused, pre-transposed."""
    k = 1.0 / np.sqrt(hidden_size)
    k0, k1, k2, k3 = jax.random.split(key, 4)
    w_ih = jax.random.uniform(k0, (3 * hidden_size, embedding_dim), jnp.float32, -k, k)
    w_hh = jax.random.uniform(k1, (3 * hidden_size, hidden_size), jnp.float32, -k, k)
    b_ih = jax.random.uniform(k2, (3 * hidden_size,), jnp.float32, -k, k)
    b_hh = jax.random.uniform(k3, (3 * hidden_size,), jnp.float32, -k, k)
    return dict(
        w_ih=jnp.transpose(w_ih),                    # (E, 3H), columns [r | z | n]
        w_hh=jnp.transpose(w_hh),                    # (H, 3H)
        b_ih=b_ih.reshape(1, 3 * hidden_size),
        b_hh=b_hh.reshape(1, 3 * hidden_size),
    )


def init_itemnn_params(key, input_size, hidden_size, embedding_dim):
    ke, kl, ks, ku1, ku2 = jax.random.split(key, 5)
    return dict(
        embedding=jax.random.normal(ke, (input_size, embedding_dim), jnp.float32),
        gru_long=init_gru_params(kl, embedding_dim, hidden_size),    # m_cate_session_gru
        gru_short=init_gru_params(ks, embedding_dim, hidden_size),   # m_short_gru
        # m_cate_ll / m_short_ll exist in __init__ but are unused in forward():
        m_cate_ll_w=jax.random.normal(ku1, (hidden_size, embedding_dim), jnp.float32) * 0.02,
        m_short_ll_w=jax.random.normal(ku2, (hidden_size, embedding_dim), jnp.float32) * 0.02,
    )


# ----------------------------------------------------------------------------- forward
def _round_up(x, m):
    return (x + m - 1) // m * m


def itemnn_forward(params, x_long, xnum_long, c_long, cnum_long,
                   x_short, xnum_short, z, train_test_flag="train"):
    del cnum_long, train_test_flag
    x_long = np.asarray(x_long)
    xnum_long = np.asarray(xnum_long)
    x_short = np.asarray(x_short)
    xnum_short = np.asarray(xnum_short)
    c_long = np.asarray(c_long)
    z_val = int(np.asarray(z).reshape(-1)[0])

    # Category mask (as in the module: expand_z = z.repeat(cnum_long,1); mask_c = c_long==expand_z).
    # GRU rows are independent, so we run the kernel over ALL long rows at a static, padded
    # shape and apply the (data-dependent) mask to the OUTPUT rows -> no kernel recompiles.
    mask_c = c_long == z_val

    B_long, T_long = x_long.shape
    B_short, T_short = x_short.shape
    B_pad = int(_round_up(max(B_long, B_short, 1), 8))   # sublane-align the batch dim
    T_pad = int(max(T_long, T_short))

    def pad_ids(x, xnum):
        xb = np.zeros((B_pad, T_pad), np.int32)
        xb[: x.shape[0], : x.shape[1]] = x
        nb = np.zeros((B_pad,), np.int32)
        nb[: xnum.shape[0]] = xnum
        return xb, nb

    xl, nl = pad_ids(x_long, xnum_long)
    xs, ns = pad_ids(x_short, xnum_short)

    out_long_all, out_short_all = _itemnn_core(
        params, jnp.asarray(xl), jnp.asarray(nl), jnp.asarray(xs), jnp.asarray(ns)
    )

    out_long = out_long_all[np.where(mask_c)[0]]   # (K, H) — rows whose category == z
    out_short = out_short_all[:B_short]            # (B, H)
    return out_long, out_short


# ----------------------------------------------------------------------------- reference
def _gru_last_ref(x_embed, xnum, p):
    """Pure-JAX reference of the PyTorch GRU + index gather (fused-weight layout)."""
    B, T, _ = x_embed.shape
    H = p["w_hh"].shape[0]
    h = jnp.zeros((B, H), jnp.float32)
    outs = []
    for t in range(T):
        x_t = x_embed[:, t, :].astype(jnp.float32)
        gi = x_t @ p["w_ih"] + p["b_ih"]
        gh = h @ p["w_hh"] + p["b_hh"]
        r = jax.nn.sigmoid(gi[:, :H] + gh[:, :H])
        z = jax.nn.sigmoid(gi[:, H:2 * H] + gh[:, H:2 * H])
        n = jnp.tanh(gi[:, 2 * H:] + r * gh[:, 2 * H:])
        h = (1.0 - z) * n + z * h
        outs.append(h)
    seq = jnp.stack(outs, axis=1)                      # (B, T, H)
    return seq[jnp.arange(B), jnp.asarray(xnum, jnp.int32)]


# ----------------------------------------------------------------------------- main
if __name__ == "__main__":
    input_size = 50       # item vocabulary
    hidden_size = 32
    output_size = 50      # unused by forward()
    embedding_dim = 32

    key = jax.random.PRNGKey(0)
    kp, kd1, kd2 = jax.random.split(key, 3)
    params = init_itemnn_params(kp, input_size, hidden_size, embedding_dim)

    # long-term sessions
    cnum_long = 6
    T_long = 8
    x_long = jax.random.randint(kd1, (cnum_long, T_long), 0, input_size, jnp.int32)
    xnum_long = np.array([3, 7, 5, 2, 6, 1], dtype=np.int32)       # last valid index / session
    c_long = np.array([1, 0, 1, 2, 1, 0], dtype=np.int32)          # category / session
    z = np.array([1], dtype=np.int32)                              # target category

    # short-term sessions
    batch = 2
    T_short = 8
    x_short = jax.random.randint(kd2, (batch, T_short), 0, input_size, jnp.int32)
    xnum_short = np.array([7, 4], dtype=np.int32)                  # numpy, as in the module

    out_long, out_short = itemnn_forward(
        params, x_long, xnum_long, c_long, cnum_long, x_short, xnum_short, z, "train"
    )
    jax.block_until_ready((out_long, out_short))

    # correctness check against pure-JAX reference
    mask_c = c_long == int(z[0])
    x_ml = np.asarray(x_long)[mask_c]
    xn_ml = xnum_long[mask_c]
    ref_long = _gru_last_ref(
        jnp.take(params["embedding"], jnp.asarray(x_ml), axis=0), xn_ml, params["gru_long"]
    )
    ref_short = _gru_last_ref(
        jnp.take(params["embedding"], jnp.asarray(x_short), axis=0), xnum_short, params["gru_short"]
    )
    np.testing.assert_allclose(np.asarray(out_long), np.asarray(ref_long), rtol=1e-4, atol=1e-4)
    np.testing.assert_allclose(np.asarray(out_short), np.asarray(ref_short), rtol=1e-4, atol=1e-4)

    assert out_long.shape == (int(mask_c.sum()), hidden_size)
    assert out_short.shape == (batch, hidden_size)
    print("KERNEL_OK")
</pallas_src>

<mosaic_0001>
module attributes {stable_mosaic.version = 11 : i64} {
  func.func @_gru_pair_kernel(%arg0: i32, %arg1: memref<1x64x32xf32, #tpu.memory_space<vmem>>, %arg2: memref<1x8x1xi32, #tpu.memory_space<vmem>>, %arg3: memref<1x32x96xf32, #tpu.memory_space<vmem>>, %arg4: memref<1x32x96xf32, #tpu.memory_space<vmem>>, %arg5: memref<1x1x96xf32, #tpu.memory_space<vmem>>, %arg6: memref<1x1x96xf32, #tpu.memory_space<vmem>>, %arg7: memref<1x8x32xf32, #tpu.memory_space<vmem>>) attributes {dimension_semantics = [#tpu.dimension_semantics<parallel>], iteration_bounds = array<i64: 2>, scalar_prefetch = 0 : i64, scratch_operands = 0 : i64, tpu.core_type = #tpu.core_type<tc>, window_params = [{transform_indices = @transform_0, window_bounds = array<i64: 1, 64, 32>}, {transform_indices = @transform_1, window_bounds = array<i64: 1, 8, 1>}, {transform_indices = @transform_2, window_bounds = array<i64: 1, 32, 96>}, {transform_indices = @transform_3, window_bounds = array<i64: 1, 32, 96>}, {transform_indices = @transform_4, window_bounds = array<i64: 1, 1, 96>}, {transform_indices = @transform_5, window_bounds = array<i64: 1, 1, 96>}, {transform_indices = @transform_6, window_bounds = array<i64: 1, 8, 32>}]} {
    %c0 = arith.constant 0 : index
    %c0_0 = arith.constant 0 : index
    %c0_1 = arith.constant 0 : index
    %0 = vector.load %arg1[%c0, %c0_0, %c0_1] : memref<1x64x32xf32, #tpu.memory_space<vmem>>, vector<1x64x32xf32>
    %1 = vector.shape_cast %0 : vector<1x64x32xf32> to vector<64x32xf32>
    %c0_2 = arith.constant 0 : index
    %c0_3 = arith.constant 0 : index
    %c0_4 = arith.constant 0 : index
    %2 = vector.load %arg3[%c0_2, %c0_3, %c0_4] : memref<1x32x96xf32, #tpu.memory_space<vmem>>, vector<1x32x96xf32>
    %3 = vector.shape_cast %2 : vector<1x32x96xf32> to vector<32x96xf32>
    %cst = arith.constant dense<0.000000e+00> : vector<64x96xf32>
    %4 = tpu.matmul %1, %3, %cst {dimension_numbers = #tpu.dot_dimension_numbers<[1], [0], [0], [1], [0, 0, 1, 1], [], []>} : vector<64x32xf32>, vector<32x96xf32>, vector<64x96xf32> -> vector<64x96xf32>
    %c0_5 = arith.constant 0 : index
    %c0_6 = arith.constant 0 : index
    %c0_7 = arith.constant 0 : index
    %5 = vector.load %arg5[%c0_5, %c0_6, %c0_7] : memref<1x1x96xf32, #tpu.memory_space<vmem>>, vector<1x1x96xf32>
    %6 = vector.shape_cast %5 : vector<1x1x96xf32> to vector<1x96xf32>
    %7 = vector.broadcast %6 : vector<1x96xf32> to vector<64x96xf32>
    %8 = arith.addf %4, %7 : vector<64x96xf32>
    %c0_8 = arith.constant 0 : index
    %c0_9 = arith.constant 0 : index
    %c0_10 = arith.constant 0 : index
    %9 = vector.load %arg4[%c0_8, %c0_9, %c0_10] : memref<1x32x96xf32, #tpu.memory_space<vmem>>, vector<1x32x96xf32>
    %10 = vector.shape_cast %9 : vector<1x32x96xf32> to vector<32x96xf32>
    %c0_11 = arith.constant 0 : index
    %c0_12 = arith.constant 0 : index
    %c0_13 = arith.constant 0 : index
    %11 = vector.load %arg6[%c0_11, %c0_12, %c0_13] : memref<1x1x96xf32, #tpu.memory_space<vmem>>, vector<1x1x96xf32>
    %12 = vector.shape_cast %11 : vector<1x1x96xf32> to vector<1x96xf32>
    %c0_14 = arith.constant 0 : index
    %c0_15 = arith.constant 0 : index
    %c0_16 = arith.constant 0 : index
    %13 = vector.load %arg2[%c0_14, %c0_15, %c0_16] : memref<1x8x1xi32, #tpu.memory_space<vmem>>, vector<1x8x1xi32>
    %14 = vector.shape_cast %13 : vector<1x8x1xi32> to vector<8x1xi32>
    %cst_17 = arith.constant 0.000000e+00 : f32
    %15 = vector.broadcast %cst_17 : f32 to vector<8x32xf32>
    %cst_18 = arith.constant 0.000000e+00 : f32
    %16 = vector.broadcast %cst_18 : f32 to vector<8x32xf32>
    %17 = vector.extract_strided_slice %8 {offsets = [0, 0], sizes = [8, 96], strides = [1, 1]} : vector<64x96xf32> to vector<8x96xf32>
    %cst_19 = arith.constant dense<0.000000e+00> : vector<8x96xf32>
    %18 = tpu.matmul %15, %10, %cst_19 {dimension_numbers = #tpu.dot_dimension_numbers<[1], [0], [0], [1], [0, 0, 1, 1], [], []>} : vector<8x32xf32>, vector<32x96xf32>, vector<8x96xf32> -> vector<8x96xf32>
    %19 = vector.broadcast %12 : vector<1x96xf32> to vector<8x96xf32>
    %20 = arith.addf %18, %19 : vector<8x96xf32>
    %21 = arith.addf %17, %20 : vector<8x96xf32>
    %22 = vector.extract_strided_slice %21 {offsets = [0, 0], sizes = [8, 32], strides = [1, 1]} : vector<8x96xf32> to vector<8x32xf32>
    %23 = arith.negf %22 : vector<8x32xf32>
    %24 = math.exp %23 : vector<8x32xf32>
    %cst_20 = arith.constant 1.000000e+00 : f32
    %25 = vector.broadcast %cst_20 : f32 to vector<8x32xf32>
    %26 = arith.addf %25, %24 : vector<8x32xf32>
    %27 = arith.divf %25, %26 : vector<8x32xf32>
    %28 = vector.extract_strided_slice %21 {offsets = [0, 32], sizes = [8, 32], strides = [1, 1]} : vector<8x96xf32> to vector<8x32xf32>
    %29 = arith.negf %28 : vector<8x32xf32>
    %30 = math.exp %29 : vector<8x32xf32>
    %cst_21 = arith.constant 1.000000e+00 : f32
    %31 = vector.broadcast %cst_21 : f32 to vector<8x32xf32>
    %32 = arith.addf %31, %30 : vector<8x32xf32>
    %33 = arith.divf %31, %32 : vector<8x32xf32>
    %34 = vector.extract_strided_slice %17 {offsets = [0, 64], sizes = [8, 32], strides = [1, 1]} : vector<8x96xf32> to vector<8x32xf32>
    %35 = vector.extract_strided_slice %20 {offsets = [0, 64], sizes = [8, 32], strides = [1, 1]} : vector<8x96xf32> to vector<8x32xf32>
    %36 = arith.mulf %27, %35 : vector<8x32xf32>
    %37 = arith.addf %34, %36 : vector<8x32xf32>
    %38 = math.tanh %37 : vector<8x32xf32>
    %cst_22 = arith.constant 1.000000e+00 : f32
    %39 = vector.broadcast %cst_22 : f32 to vector<8x32xf32>
    %40 = arith.subf %39, %33 : vector<8x32xf32>
    %41 = arith.mulf %40, %38 : vector<8x32xf32>
    %42 = arith.mulf %33, %15 : vector<8x32xf32>
    %43 = arith.addf %41, %42 : vector<8x32xf32>
    %c0_i32 = arith.constant 0 : i32
    %44 = vector.broadcast %c0_i32 : i32 to vector<8x1xi32>
    %45 = arith.cmpi eq, %14, %44 : vector<8x1xi32>
    %46 = vector.shape_cast %45 : vector<8x1xi1> to vector<8x1xi1>
    %47 = vector.broadcast %46 : vector<8x1xi1> to vector<8x32xi1>
    %48 = arith.select %47, %43, %16 : vector<8x32xi1>, vector<8x32xf32>
    %49 = vector.extract_strided_slice %8 {offsets = [8, 0], sizes = [8, 96], strides = [1, 1]} : vector<64x96xf32> to vector<8x96xf32>
    %cst_23 = arith.constant dense<0.000000e+00> : vector<8x96xf32>
    %50 = tpu.matmul %43, %10, %cst_23 {dimension_numbers = #tpu.dot_dimension_numbers<[1], [0], [0], [1], [0, 0, 1, 1], [], []>} : vector<8x32xf32>, vector<32x96xf32>, vector<8x96xf32> -> vector<8x96xf32>
    %51 = vector.broadcast %12 : vector<1x96xf32> to vector<8x96xf32>
    %52 = arith.addf %50, %51 : vector<8x96xf32>
    %53 = arith.addf %49, %52 : vector<8x96xf32>
    %54 = vector.extract_strided_slice %53 {offsets = [0, 0], sizes = [8, 32], strides = [1, 1]} : vector<8x96xf32> to vector<8x32xf32>
    %55 = arith.negf %54 : vector<8x32xf32>
    %56 = math.exp %55 : vector<8x32xf32>
    %cst_24 = arith.constant 1.000000e+00 : f32
    %57 = vector.broadcast %cst_24 : f32 to vector<8x32xf32>
    %58 = arith.addf %57, %56 : vector<8x32xf32>
    %59 = arith.divf %57, %58 : vector<8x32xf32>
    %60 = vector.extract_strided_slice %53 {offsets = [0, 32], sizes = [8, 32], strides = [1, 1]} : vector<8x96xf32> to vector<8x32xf32>
    %61 = arith.negf %60 : vector<8x32xf32>
    %62 = math.exp %61 : vector<8x32xf32>
    %cst_25 = arith.constant 1.000000e+00 : f32
    %63 = vector.broadcast %cst_25 : f32 to vector<8x32xf32>
    %64 = arith.addf %63, %62 : vector<8x32xf32>
    %65 = arith.divf %63, %64 : vector<8x32xf32>
    %66 = vector.extract_strided_slice %49 {offsets = [0, 64], sizes = [8, 32], strides = [1, 1]} : vector<8x96xf32> to vector<8x32xf32>
    %67 = vector.extract_strided_slice %52 {offsets = [0, 64], sizes = [8, 32], strides = [1, 1]} : vector<8x96xf32> to vector<8x32xf32>
    %68 = arith.mulf %59, %67 : vector<8x32xf32>
    %69 = arith.addf %66, %68 : vector<8x32xf32>
    %70 = math.tanh %69 : vector<8x32xf32>
    %cst_26 = arith.constant 1.000000e+00 : f32
    %71 = vector.broadcast %cst_26 : f32 to vector<8x32xf32>
    %72 = arith.subf %71, %65 : vector<8x32xf32>
    %73 = arith.mulf %72, %70 : vector<8x32xf32>
    %74 = arith.mulf %65, %43 : vector<8x32xf32>
    %75 = arith.addf %73, %74 : vector<8x32xf32>
    %c1_i32 = arith.constant 1 : i32
    %76 = vector.broadcast %c1_i32 : i32 to vector<8x1xi32>
    %77 = arith.cmpi eq, %14, %76 : vector<8x1xi32>
    %78 = vector.shape_cast %77 : vector<8x1xi1> to vector<8x1xi1>
    %79 = vector.broadcast %78 : vector<8x1xi1> to vector<8x32xi1>
    %80 = arith.select %79, %75, %48 : vector<8x32xi1>, vector<8x32xf32>
    %81 = vector.extract_strided_slice %8 {offsets = [16, 0], sizes = [8, 96], strides = [1, 1]} : vector<64x96xf32> to vector<8x96xf32>
    %cst_27 = arith.constant dense<0.000000e+00> : vector<8x96xf32>
    %82 = tpu.matmul %75, %10, %cst_27 {dimension_numbers = #tpu.dot_dimension_numbers<[1], [0], [0], [1], [0, 0, 1, 1], [], []>} : vector<8x32xf32>, vector<32x96xf32>, vector<8x96xf32> -> vector<8x96xf32>
    %83 = vector.broadcast %12 : vector<1x96xf32> to vector<8x96xf32>
    %84 = arith.addf %82, %83 : vector<8x96xf32>
    %85 = arith.addf %81, %84 : vector<8x96xf32>
    %86 = vector.extract_strided_slice %85 {offsets = [0, 0], sizes = [8, 32], strides = [1, 1]} : vector<8x96xf32> to vector<8x32xf32>
    %87 = arith.negf %86 : vector<8x32xf32>
    %88 = math.exp %87 : vector<8x32xf32>
    %cst_28 = arith.constant 1.000000e+00 : f32
    %89 = vector.broadcast %cst_28 : f32 to vector<8x32xf32>
    %90 = arith.addf %89, %88 : vector<8x32xf32>
    %91 = arith.divf %89, %90 : vector<8x32xf32>
    %92 = vector.extract_strided_slice %85 {offsets = [0, 32], sizes = [8, 32], strides = [1, 1]} : vector<8x96xf32> to vector<8x32xf32>
    %93 = arith.negf %92 : vector<8x32xf32>
    %94 = math.exp %93 : vector<8x32xf32>
    %cst_29 = arith.constant 1.000000e+00 : f32
    %95 = vector.broadcast %cst_29 : f32 to vector<8x32xf32>
    %96 = arith.addf %95, %94 : vector<8x32xf32>
    %97 = arith.divf %95, %96 : vector<8x32xf32>
    %98 = vector.extract_strided_slice %81 {offsets = [0, 64], sizes = [8, 32], strides = [1, 1]} : vector<8x96xf32> to vector<8x32xf32>
    %99 = vector.extract_strided_slice %84 {offsets = [0, 64], sizes = [8, 32], strides = [1, 1]} : vector<8x96xf32> to vector<8x32xf32>
    %100 = arith.mulf %91, %99 : vector<8x32xf32>
    %101 = arith.addf %98, %100 : vector<8x32xf32>
    %102 = math.tanh %101 : vector<8x32xf32>
    %cst_30 = arith.constant 1.000000e+00 : f32
    %103 = vector.broadcast %cst_30 : f32 to vector<8x32xf32>
    %104 = arith.subf %103, %97 : vector<8x32xf32>
    %105 = arith.mulf %104, %102 : vector<8x32xf32>
    %106 = arith.mulf %97, %75 : vector<8x32xf32>
    %107 = arith.addf %105, %106 : vector<8x32xf32>
    %c2_i32 = arith.constant 2 : i32
    %108 = vector.broadcast %c2_i32 : i32 to vector<8x1xi32>
    %109 = arith.cmpi eq, %14, %108 : vector<8x1xi32>
    %110 = vector.shape_cast %109 : vector<8x1xi1> to vector<8x1xi1>
    %111 = vector.broadcast %110 : vector<8x1xi1> to vector<8x32xi1>
    %112 = arith.select %111, %107, %80 : vector<8x32xi1>, vector<8x32xf32>
    %113 = vector.extract_strided_slice %8 {offsets = [24, 0], sizes = [8, 96], strides = [1, 1]} : vector<64x96xf32> to vector<8x96xf32>
    %cst_31 = arith.constant dense<0.000000e+00> : vector<8x96xf32>
    %114 = tpu.matmul %107, %10, %cst_31 {dimension_numbers = #tpu.dot_dimension_numbers<[1], [0], [0], [1], [0, 0, 1, 1], [], []>} : vector<8x32xf32>, vector<32x96xf32>, vector<8x96xf32> -> vector<8x96xf32>
    %115 = vector.broadcast %12 : vector<1x96xf32> to vector<8x96xf32>
    %116 = arith.addf %114, %115 : vector<8x96xf32>
    %117 = arith.addf %113, %116 : vector<8x96xf32>
    %118 = vector.extract_strided_slice %117 {offsets = [0, 0], sizes = [8, 32], strides = [1, 1]} : vector<8x96xf32> to vector<8x32xf32>
    %119 = arith.negf %118 : vector<8x32xf32>
    %120 = math.exp %119 : vector<8x32xf32>
    %cst_32 = arith.constant 1.000000e+00 : f32
    %121 = vector.broadcast %cst_32 : f32 to vector<8x32xf32>
    %122 = arith.addf %121, %120 : vector<8x32xf32>
    %123 = arith.divf %121, %122 : vector<8x32xf32>
    %124 = vector.extract_strided_slice %117 {offsets = [0, 32], sizes = [8, 32], strides = [1, 1]} : vector<8x96xf32> to vector<8x32xf32>
    %125 = arith.negf %124 : vector<8x32xf32>
    %126 = math.exp %125 : vector<8x32xf32>
    %cst_33 = arith.constant 1.000000e+00 : f32
    %127 = vector.broadcast %cst_33 : f32 to vector<8x32xf32>
    %128 = arith.addf %127, %126 : vector<8x32xf32>
    %129 = arith.divf %127, %128 : vector<8x32xf32>
    %130 = vector.extract_strided_slice %113 {offsets = [0, 64], sizes = [8, 32], strides = [1, 1]} : vector<8x96xf32> to vector<8x32xf32>
    %131 = vector.extract_strided_slice %116 {offsets = [0, 64], sizes = [8, 32], strides = [1, 1]} : vector<8x96xf32> to vector<8x32xf32>
    %132 = arith.mulf %123, %131 : vector<8x32xf32>
    %133 = arith.addf %130, %132 : vector<8x32xf32>
    %134 = math.tanh %133 : vector<8x32xf32>
    %cst_34 = arith.constant 1.000000e+00 : f32
    %135 = vector.broadcast %cst_34 : f32 to vector<8x32xf32>
    %136 = arith.subf %135, %129 : vector<8x32xf32>
    %137 = arith.mulf %136, %134 : vector<8x32xf32>
    %138 = arith.mulf %129, %107 : vector<8x32xf32>
    %139 = arith.addf %137, %138 : vector<8x32xf32>
    %c3_i32 = arith.constant 3 : i32
    %140 = vector.broadcast %c3_i32 : i32 to vector<8x1xi32>
    %141 = arith.cmpi eq, %14, %140 : vector<8x1xi32>
    %142 = vector.shape_cast %141 : vector<8x1xi1> to vector<8x1xi1>
    %143 = vector.broadcast %142 : vector<8x1xi1> to vector<8x32xi1>
    %144 = arith.select %143, %139, %112 : vector<8x32xi1>, vector<8x32xf32>
    %145 = vector.extract_strided_slice %8 {offsets = [32, 0], sizes = [8, 96], strides = [1, 1]} : vector<64x96xf32> to vector<8x96xf32>
    %cst_35 = arith.constant dense<0.000000e+00> : vector<8x96xf32>
    %146 = tpu.matmul %139, %10, %cst_35 {dimension_numbers = #tpu.dot_dimension_numbers<[1], [0], [0], [1], [0, 0, 1, 1], [], []>} : vector<8x32xf32>, vector<32x96xf32>, vector<8x96xf32> -> vector<8x96xf32>
    %147 = vector.broadcast %12 : vector<1x96xf32> to vector<8x96xf32>
    %148 = arith.addf %146, %147 : vector<8x96xf32>
    %149 = arith.addf %145, %148 : vector<8x96xf32>
    %150 = vector.extract_strided_slice %149 {offsets = [0, 0], sizes = [8, 32], strides = [1, 1]} : vector<8x96xf32> to vector<8x32xf32>
    %151 = arith.negf %150 : vector<8x32xf32>
    %152 = math.exp %151 : vector<8x32xf32>
    %cst_36 = arith.constant 1.000000e+00 : f32
    %153 = vector.broadcast %cst_36 : f32 to vector<8x32xf32>
    %154 = arith.addf %153, %152 : vector<8x32xf32>
    %155 = arith.divf %153, %154 : vector<8x32xf32>
    %156 = vector.extract_strided_slice %149 {offsets = [0, 32], sizes = [8, 32], strides = [1, 1]} : vector<8x96xf32> to vector<8x32xf32>
    %157 = arith.negf %156 : vector<8x32xf32>
    %158 = math.exp %157 : vector<8x32xf32>
    %cst_37 = arith.constant 1.000000e+00 : f32
    %159 = vector.broadcast %cst_37 : f32 to vector<8x32xf32>
    %160 = arith.addf %159, %158 : vector<8x32xf32>
    %161 = arith.divf %159, %160 : vector<8x32xf32>
    %162 = vector.extract_strided_slice %145 {offsets = [0, 64], sizes = [8, 32], strides = [1, 1]} : vector<8x96xf32> to vector<8x32xf32>
    %163 = vector.extract_strided_slice %148 {offsets = [0, 64], sizes = [8, 32], strides = [1, 1]} : vector<8x96xf32> to vector<8x32xf32>
    %164 = arith.mulf %155, %163 : vector<8x32xf32>
    %165 = arith.addf %162, %164 : vector<8x32xf32>
    %166 = math.tanh %165 : vector<8x32xf32>
    %cst_38 = arith.constant 1.000000e+00 : f32
    %167 = vector.broadcast %cst_38 : f32 to vector<8x32xf32>
    %168 = arith.subf %167, %161 : vector<8x32xf32>
    %169 = arith.mulf %168, %166 : vector<8x32xf32>
    %170 = arith.mulf %161, %139 : vector<8x32xf32>
    %171 = arith.addf %169, %170 : vector<8x32xf32>
    %c4_i32 = arith.constant 4 : i32
    %172 = vector.broadcast %c4_i32 : i32 to vector<8x1xi32>
    %173 = arith.cmpi eq, %14, %172 : vector<8x1xi32>
    %174 = vector.shape_cast %173 : vector<8x1xi1> to vector<8x1xi1>
    %175 = vector.broadcast %174 : vector<8x1xi1> to vector<8x32xi1>
    %176 = arith.select %175, %171, %144 : vector<8x32xi1>, vector<8x32xf32>
    %177 = vector.extract_strided_slice %8 {offsets = [40, 0], sizes = [8, 96], strides = [1, 1]} : vector<64x96xf32> to vector<8x96xf32>
    %cst_39 = arith.constant dense<0.000000e+00> : vector<8x96xf32>
    %178 = tpu.matmul %171, %10, %cst_39 {dimension_numbers = #tpu.dot_dimension_numbers<[1], [0], [0], [1], [0, 0, 1, 1], [], []>} : vector<8x32xf32>, vector<32x96xf32>, vector<8x96xf32> -> vector<8x96xf32>
    %179 = vector.broadcast %12 : vector<1x96xf32> to vector<8x96xf32>
    %180 = arith.addf %178, %179 : vector<8x96xf32>
    %181 = arith.addf %177, %180 : vector<8x96xf32>
    %182 = vector.extract_strided_slice %181 {offsets = [0, 0], sizes = [8, 32], strides = [1, 1]} : vector<8x96xf32> to vector<8x32xf32>
    %183 = arith.negf %182 : vector<8x32xf32>
    %184 = math.exp %183 : vector<8x32xf32>
    %cst_40 = arith.constant 1.000000e+00 : f32
    %185 = vector.broadcast %cst_40 : f32 to vector<8x32xf32>
    %186 = arith.addf %185, %184 : vector<8x32xf32>
    %187 = arith.divf %185, %186 : vector<8x32xf32>
    %188 = vector.extract_strided_slice %181 {offsets = [0, 32], sizes = [8, 32], strides = [1, 1]} : vector<8x96xf32> to vector<8x32xf32>
    %189 = arith.negf %188 : vector<8x32xf32>
    %190 = math.exp %189 : vector<8x32xf32>
    %cst_41 = arith.constant 1.000000e+00 : f32
    %191 = vector.broadcast %cst_41 : f32 to vector<8x32xf32>
    %192 = arith.addf %191, %190 : vector<8x32xf32>
    %193 = arith.divf %191, %192 : vector<8x32xf32>
    %194 = vector.extract_strided_slice %177 {offsets = [0, 64], sizes = [8, 32], strides = [1, 1]} : vector<8x96xf32> to vector<8x32xf32>
    %195 = vector.extract_strided_slice %180 {offsets = [0, 64], sizes = [8, 32], strides = [1, 1]} : vector<8x96xf32> to vector<8x32xf32>
    %196 = arith.mulf %187, %195 : vector<8x32xf32>
    %197 = arith.addf %194, %196 : vector<8x32xf32>
    %198 = math.tanh %197 : vector<8x32xf32>
    %cst_42 = arith.constant 1.000000e+00 : f32
    %199 = vector.broadcast %cst_42 : f32 to vector<8x32xf32>
    %200 = arith.subf %199, %193 : vector<8x32xf32>
    %201 = arith.mulf %200, %198 : vector<8x32xf32>
    %202 = arith.mulf %193, %171 : vector<8x32xf32>
    %203 = arith.addf %201, %202 : vector<8x32xf32>
    %c5_i32 = arith.constant 5 : i32
    %204 = vector.broadcast %c5_i32 : i32 to vector<8x1xi32>
    %205 = arith.cmpi eq, %14, %204 : vector<8x1xi32>
    %206 = vector.shape_cast %205 : vector<8x1xi1> to vector<8x1xi1>
    %207 = vector.broadcast %206 : vector<8x1xi1> to vector<8x32xi1>
    %208 = arith.select %207, %203, %176 : vector<8x32xi1>, vector<8x32xf32>
    %209 = vector.extract_strided_slice %8 {offsets = [48, 0], sizes = [8, 96], strides = [1, 1]} : vector<64x96xf32> to vector<8x96xf32>
    %cst_43 = arith.constant dense<0.000000e+00> : vector<8x96xf32>
    %210 = tpu.matmul %203, %10, %cst_43 {dimension_numbers = #tpu.dot_dimension_numbers<[1], [0], [0], [1], [0, 0, 1, 1], [], []>} : vector<8x32xf32>, vector<32x96xf32>, vector<8x96xf32> -> vector<8x96xf32>
    %211 = vector.broadcast %12 : vector<1x96xf32> to vector<8x96xf32>
    %212 = arith.addf %210, %211 : vector<8x96xf32>
    %213 = arith.addf %209, %212 : vector<8x96xf32>
    %214 = vector.extract_strided_slice %213 {offsets = [0, 0], sizes = [8, 32], strides = [1, 1]} : vector<8x96xf32> to vector<8x32xf32>
    %215 = arith.negf %214 : vector<8x32xf32>
    %216 = math.exp %215 : vector<8x32xf32>
    %cst_44 = arith.constant 1.000000e+00 : f32
    %217 = vector.broadcast %cst_44 : f32 to vector<8x32xf32>
    %218 = arith.addf %217, %216 : vector<8x32xf32>
    %219 = arith.divf %217, %218 : vector<8x32xf32>
    %220 = vector.extract_strided_slice %213 {offsets = [0, 32], sizes = [8, 32], strides = [1, 1]} : vector<8x96xf32> to vector<8x32xf32>
    %221 = arith.negf %220 : vector<8x32xf32>
    %222 = math.exp %221 : vector<8x32xf32>
    %cst_45 = arith.constant 1.000000e+00 : f32
    %223 = vector.broadcast %cst_45 : f32 to vector<8x32xf32>
    %224 = arith.addf %223, %222 : vector<8x32xf32>
    %225 = arith.divf %223, %224 : vector<8x32xf32>
    %226 = vector.extract_strided_slice %209 {offsets = [0, 64], sizes = [8, 32], strides = [1, 1]} : vector<8x96xf32> to vector<8x32xf32>
    %227 = vector.extract_strided_slice %212 {offsets = [0, 64], sizes = [8, 32], strides = [1, 1]} : vector<8x96xf32> to vector<8x32xf32>
    %228 = arith.mulf %219, %227 : vector<8x32xf32>
    %229 = arith.addf %226, %228 : vector<8x32xf32>
    %230 = math.tanh %229 : vector<8x32xf32>
    %cst_46 = arith.constant 1.000000e+00 : f32
    %231 = vector.broadcast %cst_46 : f32 to vector<8x32xf32>
    %232 = arith.subf %231, %225 : vector<8x32xf32>
    %233 = arith.mulf %232, %230 : vector<8x32xf32>
    %234 = arith.mulf %225, %203 : vector<8x32xf32>
    %235 = arith.addf %233, %234 : vector<8x32xf32>
    %c6_i32 = arith.constant 6 : i32
    %236 = vector.broadcast %c6_i32 : i32 to vector<8x1xi32>
    %237 = arith.cmpi eq, %14, %236 : vector<8x1xi32>
    %238 = vector.shape_cast %237 : vector<8x1xi1> to vector<8x1xi1>
    %239 = vector.broadcast %238 : vector<8x1xi1> to vector<8x32xi1>
    %240 = arith.select %239, %235, %208 : vector<8x32xi1>, vector<8x32xf32>
    %241 = vector.extract_strided_slice %8 {offsets = [56, 0], sizes = [8, 96], strides = [1, 1]} : vector<64x96xf32> to vector<8x96xf32>
    %cst_47 = arith.constant dense<0.000000e+00> : vector<8x96xf32>
    %242 = tpu.matmul %235, %10, %cst_47 {dimension_numbers = #tpu.dot_dimension_numbers<[1], [0], [0], [1], [0, 0, 1, 1], [], []>} : vector<8x32xf32>, vector<32x96xf32>, vector<8x96xf32> -> vector<8x96xf32>
    %243 = vector.broadcast %12 : vector<1x96xf32> to vector<8x96xf32>
    %244 = arith.addf %242, %243 : vector<8x96xf32>
    %245 = arith.addf %241, %244 : vector<8x96xf32>
    %246 = vector.extract_strided_slice %245 {offsets = [0, 0], sizes = [8, 32], strides = [1, 1]} : vector<8x96xf32> to vector<8x32xf32>
    %247 = arith.negf %246 : vector<8x32xf32>
    %248 = math.exp %247 : vector<8x32xf32>
    %cst_48 = arith.constant 1.000000e+00 : f32
    %249 = vector.broadcast %cst_48 : f32 to vector<8x32xf32>
    %250 = arith.addf %249, %248 : vector<8x32xf32>
    %251 = arith.divf %249, %250 : vector<8x32xf32>
    %252 = vector.extract_strided_slice %245 {offsets = [0, 32], sizes = [8, 32], strides = [1, 1]} : vector<8x96xf32> to vector<8x32xf32>
    %253 = arith.negf %252 : vector<8x32xf32>
    %254 = math.exp %253 : vector<8x32xf32>
    %cst_49 = arith.constant 1.000000e+00 : f32
    %255 = vector.broadcast %cst_49 : f32 to vector<8x32xf32>
    %256 = arith.addf %255, %254 : vector<8x32xf32>
    %257 = arith.divf %255, %256 : vector<8x32xf32>
    %258 = vector.extract_strided_slice %241 {offsets = [0, 64], sizes = [8, 32], strides = [1, 1]} : vector<8x96xf32> to vector<8x32xf32>
    %259 = vector.extract_strided_slice %244 {offsets = [0, 64], sizes = [8, 32], strides = [1, 1]} : vector<8x96xf32> to vector<8x32xf32>
    %260 = arith.mulf %251, %259 : vector<8x32xf32>
    %261 = arith.addf %258, %260 : vector<8x32xf32>
    %262 = math.tanh %261 : vector<8x32xf32>
    %cst_50 = arith.constant 1.000000e+00 : f32
    %263 = vector.broadcast %cst_50 : f32 to vector<8x32xf32>
    %264 = arith.subf %263, %257 : vector<8x32xf32>
    %265 = arith.mulf %264, %262 : vector<8x32xf32>
    %266 = arith.mulf %257, %235 : vector<8x32xf32>
    %267 = arith.addf %265, %266 : vector<8x32xf32>
    %c7_i32 = arith.constant 7 : i32
    %268 = vector.broadcast %c7_i32 : i32 to vector<8x1xi32>
    %269 = arith.cmpi eq, %14, %268 : vector<8x1xi32>
    %270 = vector.shape_cast %269 : vector<8x1xi1> to vector<8x1xi1>
    %271 = vector.broadcast %270 : vector<8x1xi1> to vector<8x32xi1>
    %272 = arith.select %271, %267, %240 : vector<8x32xi1>, vector<8x32xf32>
    %c0_51 = arith.constant 0 : index
    %c0_52 = arith.constant 0 : index
    %c0_53 = arith.constant 0 : index
    %273 = vector.load %arg7[%c0_51, %c0_52, %c0_53] : memref<1x8x32xf32, #tpu.memory_space<vmem>>, vector<1x8x32xf32>
    %274 = vector.shape_cast %273 : vector<1x8x32xf32> to vector<8x32xf32>
    %275 = vector.shape_cast %272 : vector<8x32xf32> to vector<1x8x32xf32>
    tpu.vector_store %arg7[%c0_51, %c0_52, %c0_53], %275 {strides = array<i32>} : memref<1x8x32xf32, #tpu.memory_space<vmem>>, vector<1x8x32xf32>,
    return
  }
  func.func @transform_0(%arg0: i32) -> (i32, i32, i32) {
    %c0_i32 = arith.constant 0 : i32
    %c0_i32_0 = arith.constant 0 : i32
    %c0_i32_1 = arith.constant 0 : i32
    return %arg0, %c0_i32, %c0_i32_0 : i32, i32, i32
  }
  func.func @transform_1(%arg0: i32) -> (i32, i32, i32) {
    %c0_i32 = arith.constant 0 : i32
    %c0_i32_0 = arith.constant 0 : i32
    %c0_i32_1 = arith.constant 0 : i32
    return %arg0, %c0_i32, %c0_i32_0 : i32, i32, i32
  }
  func.func @transform_2(%arg0: i32) -> (i32, i32, i32) {
    %c0_i32 = arith.constant 0 : i32
    %c0_i32_0 = arith.constant 0 : i32
    %c0_i32_1 = arith.constant 0 : i32
    return %arg0, %c0_i32, %c0_i32_0 : i32, i32, i32
  }
  func.func @transform_3(%arg0: i32) -> (i32, i32, i32) {
    %c0_i32 = arith.constant 0 : i32
    %c0_i32_0 = arith.constant 0 : i32
    %c0_i32_1 = arith.constant 0 : i32
    return %arg0, %c0_i32, %c0_i32_0 : i32, i32, i32
  }
  func.func @transform_4(%arg0: i32) -> (i32, i32, i32) {
    %c0_i32 = arith.constant 0 : i32
    %c0_i32_0 = arith.constant 0 : i32
    %c0_i32_1 = arith.constant 0 : i32
    return %arg0, %c0_i32, %c0_i32_0 : i32, i32, i32
  }
  func.func @transform_5(%arg0: i32) -> (i32, i32, i32) {
    %c0_i32 = arith.constant 0 : i32
    %c0_i32_0 = arith.constant 0 : i32
    %c0_i32_1 = arith.constant 0 : i32
    return %arg0, %c0_i32, %c0_i32_0 : i32, i32, i32
  }
  func.func @transform_6(%arg0: i32) -> (i32, i32, i32) {
    %c0_i32 = arith.constant 0 : i32
    %c0_i32_0 = arith.constant 0 : i32
    %c0_i32_1 = arith.constant 0 : i32
    return %arg0, %c0_i32, %c0_i32_0 : i32, i32, i32
  }
}

</mosaic_0001>

<llo_original>
// kernel: _itemnn_core.1
$region0: #{_itemnn_core.1}
  #allocation0 [shape = 'u32[]', space=smem, size = 0x4, offset = 0x4, fixed_abs, tag = 'smem constant byte address 0x4 - core index']
  #allocation1 [shape = 'u32[144,128]{1,0:T(1,128)}', space=vmem, size = 0x12000, scoped, tag = 'internal scratch']
  %s0 = inlined_call_operand.vmem [shape: f32[2,64,32], index: 0, kind: input, shape index: {}]
  %s1 = inlined_call_operand.vmem [shape: s32[2,8,1], index: 1, kind: input, shape index: {}]
  %s2 = inlined_call_operand.vmem [shape: f32[2,32,96], index: 2, kind: input, shape index: {}]
  %s3 = inlined_call_operand.vmem [shape: f32[2,32,96], index: 3, kind: input, shape index: {}]
  %s4 = inlined_call_operand.vmem [shape: f32[2,1,96], index: 4, kind: input, shape index: {}]
  %s5 = inlined_call_operand.vmem [shape: f32[2,1,96], index: 5, kind: input, shape index: {}]
  %s6 = inlined_call_operand.vmem [shape: f32[2,8,32], index: 6, kind: output, shape index: {}]
  %s7 = sld [smem:[#allocation0]]
  $region57: #{_itemnn_core.1} parent=0
    _
  %s9 = ssub.s32 1, %s7
  %s10 = scalar_select 0, %s9, %s7
  loop: start=0, step=1, limit=4
  $region2: #{_itemnn_core.1} parent=0 // loop_pre_header
    _
  $region3: #{_itemnn_core.1} parent=0 // loop_header
    %s12 = sphi 0, %s16
    %p13 = scmp.ge.s32.totalorder %s12, 4
    %s22 = sphi 0, %s24
    %s25 = sphi 0, %s22
    %s26 = sphi 0, %s25
    %s42 = sphi 0, %s26
    %s48 = sphi 0, %s50
    %s51 = sphi 0, %s48
    %s52 = sphi 0, %s51
    %s68 = sphi 0, %s52
    %s74 = sphi 0, %s76
    %s77 = sphi 0, %s74
    %s78 = sphi 0, %s77
    %s94 = sphi 0, %s78
    %s100 = sphi 0, %s102
    %s103 = sphi 0, %s100
    %s104 = sphi 0, %s103
    %s120 = sphi 0, %s104
    %s126 = sphi 0, %s128
    %s129 = sphi 0, %s126
    %s130 = sphi 0, %s129
    %s146 = sphi 0, %s130
    %s152 = sphi 0, %s154
    %s155 = sphi 0, %s152
    %s156 = sphi 0, %s155
    %s172 = sphi 0, %s156
    %s178 = sphi 0, %s180
    %s181 = sphi 0, %s178
    %s182 = sphi 0, %s181
    %s198 = sphi 0, %s182
  $region4: #{_itemnn_core.1} parent=0 // loop_header_branch
    %15 = sbr.rel (%p13) target = $region8
  $region5: #{_itemnn_core.1} parent=0 // loop_body
    %s17 = ssub.s32 %s12, 1
    %s18 = ssub.s32 %s12, 2
    %s19 = sadd.s32 %s12, 1
    %s20 = ssub.s32 %s12, %s19
    %p21 = scmp.eq.s32.totalorder %s20, 0
    %s23 = sadd.s32 %s22, 1
    %s24 = scalar_select %p21, %s22, %s23
    %p27 = pneg %p21
    %p28 = scmp.eq.s32.totalorder %s12, 1
    %p29 = por %p27, %p28
    %p30 = scmp.ne.s32.totalorder %s22, %s25
    %p31 = scmp.eq.s32.totalorder %s12, 0
    %p32 = por %p30, %p31
    %p33 = scmp.ne.s32.totalorder %s22, %s25
    %p34 = scmp.eq.s32.totalorder %s17, 1
    %p35 = por %p33, %p34
    %p36 = scmp.ne.s32.totalorder %s25, %s26
    %p37 = scmp.eq.s32.totalorder %s17, 0
    %p38 = por %p36, %p37
    %p39 = scmp.ne.s32.totalorder %s25, %s26
    %p40 = scmp.eq.s32.totalorder %s18, 1
    %p41 = por %p39, %p40
    %p43 = scmp.ne.s32.totalorder %s26, %s42
    %p44 = scmp.eq.s32.totalorder %s18, 0
    %p45 = por %p43, %p44
    %s46 = ssub.s32 %s12, %s19
    %p47 = scmp.eq.s32.totalorder %s46, 0
    %s49 = sadd.s32 %s48, 1
    %s50 = scalar_select %p47, %s48, %s49
    %p53 = pneg %p47
    %p54 = scmp.eq.s32.totalorder %s12, 1
    %p55 = por %p53, %p54
    %p56 = scmp.ne.s32.totalorder %s48, %s51
    %p57 = scmp.eq.s32.totalorder %s12, 0
    %p58 = por %p56, %p57
    %p59 = scmp.ne.s32.totalorder %s48, %s51
    %p60 = scmp.eq.s32.totalorder %s17, 1
    %p61 = por %p59, %p60
    %p62 = scmp.ne.s32.totalorder %s51, %s52
    %p63 = scmp.eq.s32.totalorder %s17, 0
    %p64 = por %p62, %p63
    %p65 = scmp.ne.s32.totalorder %s51, %s52
    %p66 = scmp.eq.s32.totalorder %s18, 1
    %p67 = por %p65, %p66
    %p69 = scmp.ne.s32.totalorder %s52, %s68
    %p70 = scmp.eq.s32.totalorder %s18, 0
    %p71 = por %p69, %p70
    %s72 = ssub.s32 %s12, %s19
    %p73 = scmp.eq.s32.totalorder %s72, 0
    %s75 = sadd.s32 %s74, 1
    %s76 = scalar_select %p73, %s74, %s75
    %p79 = pneg %p73
    %p80 = scmp.eq.s32.totalorder %s12, 1
    %p81 = por %p79, %p80
    %p82 = scmp.ne.s32.totalorder %s74, %s77
    %p83 = scmp.eq.s32.totalorder %s12, 0
    %p84 = por %p82, %p83
    %p85 = scmp.ne.s32.totalorder %s74, %s77
    %p86 = scmp.eq.s32.totalorder %s17, 1
    %p87 = por %p85, %p86
    %p88 = scmp.ne.s32.totalorder %s77, %s78
    %p89 = scmp.eq.s32.totalorder %s17, 0
    %p90 = por %p88, %p89
    %p91 = scmp.ne.s32.totalorder %s77, %s78
    %p92 = scmp.eq.s32.totalorder %s18, 1
    %p93 = por %p91, %p92
    %p95 = scmp.ne.s32.totalorder %s78, %s94
    %p96 = scmp.eq.s32.totalorder %s18, 0
    %p97 = por %p95, %p96
    %s98 = ssub.s32 %s12, %s19
    %p99 = scmp.eq.s32.totalorder %s98, 0
    %s101 = sadd.s32 %s100, 1
    %s102 = scalar_select %p99, %s100, %s101
    %p105 = pneg %p99
    %p106 = scmp.eq.s32.totalorder %s12, 1
    %p107 = por %p105, %p106
    %p108 = scmp.ne.s32.totalorder %s100, %s103
    %p109 = scmp.eq.s32.totalorder %s12, 0
    %p110 = por %p108, %p109
    %p111 = scmp.ne.s32.totalorder %s100, %s103
    %p112 = scmp.eq.s32.totalorder %s17, 1
    %p113 = por %p111, %p112
    %p114 = scmp.ne.s32.totalorder %s103, %s104
    %p115 = scmp.eq.s32.totalorder %s17, 0
    %p116 = por %p114, %p115
    %p117 = scmp.ne.s32.totalorder %s103, %s104
    %p118 = scmp.eq.s32.totalorder %s18, 1
    %p119 = por %p117, %p118
    %p121 = scmp.ne.s32.totalorder %s104, %s120
    %p122 = scmp.eq.s32.totalorder %s18, 0
    %p123 = por %p121, %p122
    %s124 = ssub.s32 %s12, %s19
    %p125 = scmp.eq.s32.totalorder %s124, 0
    %s127 = sadd.s32 %s126, 1
    %s128 = scalar_select %p125, %s126, %s127
    %p131 = pneg %p125
    %p132 = scmp.eq.s32.totalorder %s12, 1
    %p133 = por %p131, %p132
    %p134 = scmp.ne.s32.totalorder %s126, %s129
    %p135 = scmp.eq.s32.totalorder %s12, 0
    %p136 = por %p134, %p135
    %p137 = scmp.ne.s32.totalorder %s126, %s129
    %p138 = scmp.eq.s32.totalorder %s17, 1
    %p139 = por %p137, %p138
    %p140 = scmp.ne.s32.totalorder %s129, %s130
    %p141 = scmp.eq.s32.totalorder %s17, 0
    %p142 = por %p140, %p141
    %p143 = scmp.ne.s32.totalorder %s129, %s130
    %p144 = scmp.eq.s32.totalorder %s18, 1
    %p145 = por %p143, %p144
    %p147 = scmp.ne.s32.totalorder %s130, %s146
    %p148 = scmp.eq.s32.totalorder %s18, 0
    %p149 = por %p147, %p148
    %s150 = ssub.s32 %s12, %s19
    %p151 = scmp.eq.s32.totalorder %s150, 0
    %s153 = sadd.s32 %s152, 1
    %s154 = scalar_select %p151, %s152, %s153
    %p157 = pneg %p151
    %p158 = scmp.eq.s32.totalorder %s12, 1
    %p159 = por %p157, %p158
    %p160 = scmp.ne.s32.totalorder %s152, %s155
    %p161 = scmp.eq.s32.totalorder %s12, 0
    %p162 = por %p160, %p161
    %p163 = scmp.ne.s32.totalorder %s152, %s155
    %p164 = scmp.eq.s32.totalorder %s17, 1
    %p165 = por %p163, %p164
    %p166 = scmp.ne.s32.totalorder %s155, %s156
    %p167 = scmp.eq.s32.totalorder %s17, 0
    %p168 = por %p166, %p167
    %p169 = scmp.ne.s32.totalorder %s155, %s156
    %p170 = scmp.eq.s32.totalorder %s18, 1
    %p171 = por %p169, %p170
    %p173 = scmp.ne.s32.totalorder %s156, %s172
    %p174 = scmp.eq.s32.totalorder %s18, 0
    %p175 = por %p173, %p174
    %s176 = ssub.s32 %s12, %s19
    %p177 = scmp.eq.s32.totalorder %s176, 0
    %s179 = sadd.s32 %s178, 1
    %s180 = scalar_select %p177, %s178, %s179
    %p183 = pneg %p177
    %p184 = scmp.eq.s32.totalorder %s12, 1
    %p185 = por %p183, %p184
    %p186 = scmp.ne.s32.totalorder %s178, %s181
    %p187 = scmp.eq.s32.totalorder %s12, 0
    %p188 = por %p186, %p187
    %p189 = scmp.ne.s32.totalorder %s178, %s181
    %p190 = scmp.eq.s32.totalorder %s17, 1
    %p191 = por %p189, %p190
    %p192 = scmp.ne.s32.totalorder %s181, %s182
    %p193 = scmp.eq.s32.totalorder %s17, 0
    %p194 = por %p192, %p193
    %p195 = scmp.ne.s32.totalorder %s181, %s182
    %p196 = scmp.eq.s32.totalorder %s18, 1
    %p197 = por %p195, %p196
    %p199 = scmp.ne.s32.totalorder %s182, %s198
    %p200 = scmp.eq.s32.totalorder %s18, 0
    %p201 = por %p199, %p200
    %p202 = scmp.le.s32.totalorder 1, %s12
    %p203 = scmp.lt.s32.totalorder %s12, 3
    %p204 = pnand %p202, %p203
    %p205 = pneg %p204
    // Predicated region
    $region9: #{_itemnn_core.1} parent=5 // pred_check
      _
    $region10: #{_itemnn_core.1} parent=5 // pred_check_branch
      %207 = sbr.rel (%p204) target = $region12
    $region11: #{_itemnn_core.1} parent=5 // pred_region
      %s208 = ssub.s32 %s12, 1
    $region12: #{_itemnn_core.1} parent=5 // pred_fallthru
      _
    %p209 = scmp.lt.s32.totalorder %s12, 2
    // Predicated region
    $region13: #{_itemnn_core.1} parent=5 // pred_check
      %p210 = pneg %p209
    $region14: #{_itemnn_core.1} parent=5 // pred_check_branch
      %212 = sbr.rel (%p210) target = $region16
    $region15: #{_itemnn_core.1} parent=5 // pred_region
      // Predicated region
      $region17: #{_itemnn_core.1} parent=15 // pred_check
        %p213 = pneg %p32
      $region18: #{_itemnn_core.1} parent=15 // pred_check_branch
        %215 = sbr.rel (%p213) target = $region20
      $region19: #{_itemnn_core.1} parent=15 // pred_region
        %p216 = scmp.lt.s32.totalorder %s12, 1
        %s217 = scalar_select %p216, %s12, 1
        %s218 = smul.addr %s217, 8
        %s219 = smul.addr %s218, 8
        %s220 = scalar_lea.vmem %s0, %s219
      $region20: #{_itemnn_core.1} parent=15 // pred_fallthru
        _
      // Predicated region
      $region21: #{_itemnn_core.1} parent=15 // pred_check
        %p221 = pneg %p58
      $region22: #{_itemnn_core.1} parent=15 // pred_check_branch
        %223 = sbr.rel (%p221) target = $region24
      $region23: #{_itemnn_core.1} parent=15 // pred_region
        %p224 = scmp.lt.s32.totalorder %s12, 1
        %s225 = scalar_select %p224, %s12, 1
        %s226 = smul.addr %s225, 8
        %s227 = scalar_lea.vmem %s1, %s226
      $region24: #{_itemnn_core.1} parent=15 // pred_fallthru
        _
      // Predicated region
      $region25: #{_itemnn_core.1} parent=15 // pred_check
        %p228 = pneg %p84
      $region26: #{_itemnn_core.1} parent=15 // pred_check_branch
        %230 = sbr.rel (%p228) target = $region28
      $region27: #{_itemnn_core.1} parent=15 // pred_region
        %p231 = scmp.lt.s32.totalorder %s12, 1
        %s232 = scalar_select %p231, %s12, 1
        %s233 = smul.addr %s232, 4
        %s234 = smul.addr %s233, 8
        %s235 = scalar_lea.vmem %s2, %s234
      $region28: #{_itemnn_core.1} parent=15 // pred_fallthru
        _
      // Predicated region
      $region29: #{_itemnn_core.1} parent=15 // pred_check
        %p236 = pneg %p110
      $region30: #{_itemnn_core.1} parent=15 // pred_check_branch
        %238 = sbr.rel (%p236) target = $region32
      $region31: #{_itemnn_core.1} parent=15 // pred_region
        %p239 = scmp.lt.s32.totalorder %s12, 1
        %s240 = scalar_select %p239, %s12, 1
        %s241 = smul.addr %s240, 4
        %s242 = smul.addr %s241, 8
        %s243 = scalar_lea.vmem %s3, %s242
      $region32: #{_itemnn_core.1} parent=15 // pred_fallthru
        _
      // Predicated region
      $region33: #{_itemnn_core.1} parent=15 // pred_check
        %p244 = pneg %p136
      $region34: #{_itemnn_core.1} parent=15 // pred_check_branch
        %246 = sbr.rel (%p244) target = $region36
      $region35: #{_itemnn_core.1} parent=15 // pred_region
        %p247 = scmp.lt.s32.totalorder %s12, 1
        %s248 = scalar_select %p247, %s12, 1
        %s249 = scalar_lea.vmem %s4, %s248
      $region36: #{_itemnn_core.1} parent=15 // pred_fallthru
        _
      // Predicated region
      $region37: #{_itemnn_core.1} parent=15 // pred_check
        %p250 = pneg %p162
      $region38: #{_itemnn_core.1} parent=15 // pred_check_branch
        %252 = sbr.rel (%p250) target = $region40
      $region39: #{_itemnn_core.1} parent=15 // pred_region
        %p253 = scmp.lt.s32.totalorder %s12, 1
        %s254 = scalar_select %p253, %s12, 1
        %s255 = scalar_lea.vmem %s5, %s254
      $region40: #{_itemnn_core.1} parent=15 // pred_fallthru
        _
    $region16: #{_itemnn_core.1} parent=5 // pred_fallthru
      _
    %p256 = scmp.le.s32.totalorder 1, %s12
    %p257 = scmp.lt.s32.totalorder %s12, 3
    %p258 = pnand %p256, %p257
    %p259 = pneg %p258
    // Predicated region
    $region41: #{_itemnn_core.1} parent=5 // pred_check
      _
    $region42: #{_itemnn_core.1} parent=5 // pred_check_branch
      %261 = sbr.rel (%p258) target = $region44
    $region43: #{_itemnn_core.1} parent=5 // pred_region
      %s262 = ssub.s32 %s12, 1
      %p263 = scmp.lt.s32.totalorder %s17, 1
      %s264 = scalar_select %p263, %s17, 1
      %s265 = smul.addr %s264, 8
      %s266 = smul.addr %s265, 8
      %s267 = scalar_lea.vmem %s0, %s266
      %p268 = pneg %p38
      %p269 = pneg %p35
      %p270 = scmp.lt.s32.totalorder %s17, 1
      %s271 = scalar_select %p270, %s17, 1
      %s272 = smul.addr %s271, 8
      %s273 = scalar_lea.vmem %s1, %s272
      %p274 = pneg %p64
      %p275 = pneg %p61
      %p276 = scmp.lt.s32.totalorder %s17, 1
      %s277 = scalar_select %p276, %s17, 1
      %s278 = smul.addr %s277, 4
      %s279 = smul.addr %s278, 8
      %s280 = scalar_lea.vmem %s2, %s279
      %p281 = pneg %p90
      %p282 = pneg %p87
      %p283 = scmp.lt.s32.totalorder %s17, 1
      %s284 = scalar_select %p283, %s17, 1
      %s285 = smul.addr %s284, 4
      %s286 = smul.addr %s285, 8
      %s287 = scalar_lea.vmem %s3, %s286
      %p288 = pneg %p116
      %p289 = pneg %p113
      %p290 = scmp.lt.s32.totalorder %s17, 1
      %s291 = scalar_select %p290, %s17, 1
      %s292 = scalar_lea.vmem %s4, %s291
      %p293 = pneg %p142
      %p294 = pneg %p139
      %p295 = scmp.lt.s32.totalorder %s17, 1
      %s296 = scalar_select %p295, %s17, 1
      %s297 = scalar_lea.vmem %s5, %s296
      %p298 = pneg %p168
      %p299 = pneg %p165
      %p300 = pneg %p194
      %p301 = pneg %p191
      %p302 = scmp.lt.s32.totalorder %s17, 1
      %s303 = scalar_select %p302, %s17, 1
      %s304 = smul.addr %s303, 8
      %s305 = scalar_lea.vmem %s6, %s304
      %p306 = scmp.lt.s32.totalorder %s17, 1
      %s307 = scalar_select %p306, %s17, 1
      %s308 = smul.addr %s307, 8
      %s309 = smul.addr %s308, 8
      %s310 = scalar_lea.vmem %s0, %s309
      %p311 = scmp.lt.s32.totalorder %s17, 1
      %s312 = scalar_select %p311, %s17, 1
      %s313 = smul.addr %s312, 8
      %s314 = scalar_lea.vmem %s1, %s313
      %p315 = scmp.lt.s32.totalorder %s17, 1
      %s316 = scalar_select %p315, %s17, 1
      %s317 = smul.addr %s316, 4
      %s318 = smul.addr %s317, 8
      %s319 = scalar_lea.vmem %s2, %s318
      %p320 = scmp.lt.s32.totalorder %s17, 1
      %s321 = scalar_select %p320, %s17, 1
      %s322 = smul.addr %s321, 4
      %s323 = smul.addr %s322, 8
      %s324 = scalar_lea.vmem %s3, %s323
      %p325 = scmp.lt.s32.totalorder %s17, 1
      %s326 = scalar_select %p325, %s17, 1
      %s327 = scalar_lea.vmem %s4, %s326
      %p328 = scmp.lt.s32.totalorder %s17, 1
      %s329 = scalar_select %p328, %s17, 1
      %s330 = scalar_lea.vmem %s5, %s329
      %p331 = scmp.lt.s32.totalorder %s17, 1
      %s332 = scalar_select %p331, %s17, 1
      %s333 = smul.addr %s332, 8
      %s334 = scalar_lea.vmem %s6, %s333
      %v335 = vld [vmem:[%s310] sm:$0xff]
      %v336 = vld [vmem:[%s310 + $0x8] sm:$0xff]
      %v337 = vld [vmem:[%s310 + $0x10] sm:$0xff]
      %v338 = vld [vmem:[%s310 + $0x18] sm:$0xff]
      %v339 = vld [vmem:[%s310 + $0x20] sm:$0xff]
      %v340 = vld [vmem:[%s310 + $0x28] sm:$0xff]
      %v341 = vld [vmem:[%s310 + $0x30] sm:$0xff]
      %v342 = vld [vmem:[%s310 + $0x38] sm:$0xff]
      %v343 = vld [vmem:[%s319] sm:$0xff]
      %v344 = vld [vmem:[%s319 + $0x8] sm:$0xff]
      %v345 = vld [vmem:[%s319 + $0x10] sm:$0xff]
      %v346 = vld [vmem:[%s319 + $0x18] sm:$0xff]
      %v347 = vld [vmem:[%s327] sm:$0x1]
      %v349 = vlaneseq
      %v350 = vshrl.u32 %v349, 7
      %v351 = vsub.s32 0, %v350
      %v352 = vrot.slane %v347, %v351
      %vm354 = vcmask 261120
      %v356 = vsel %vm354, %v335, 0
      %v359 = vsel %vm354, %v336, 0
      %v362 = vsel %vm354, %v337, 0
      %v365 = vsel %vm354, %v338, 0
      %v368 = vsel %vm354, %v339, 0
      %v371 = vsel %vm354, %v340, 0
      %v374 = vsel %vm354, %v341, 0
      %v377 = vsel %vm354, %v342, 0
      %379 = vmatprep.subr.mxu0 0.0
      %380 = vmatpush1.msra.mxu0 %v343
      %381 = vmatprep.subr.mxu0 0.0
      %382 = vmatpush1.msra.mxu0 %v344
      %383 = vmatprep.subr.mxu0 0.0
      %384 = vmatpush1.msra.mxu0 %v345
      %385 = vmatprep.subr.mxu0 0.0
      %386 = vmatpush1.msra.mxu0 %v346
      %387 = vmatprep.subr.mxu0 0.0
      %388 = vmatpush1.msra.mxu0 0.0
      %389 = vmatprep.subr.mxu0 0.0
      %390 = vmatpush1.msra.mxu0 0.0
      %391 = vmatprep.subr.mxu0 0.0
      %392 = vmatpush1.msra.mxu0 0.0
      %393 = vmatprep.subr.mxu0 0.0
      %394 = vmatpush1.msra.mxu0 0.0
      %395 = vmatprep.subr.mxu0 0.0
      %396 = vmatpush1.msra.mxu0 0.0
      %397 = vmatprep.subr.mxu0 0.0
      %398 = vmatpush1.msra.mxu0 0.0
      %399 = vmatprep.subr.mxu0 0.0
      %400 = vmatpush1.msra.mxu0 0.0
      %401 = vmatprep.subr.mxu0 0.0
      %402 = vmatpush1.msra.mxu0 0.0
      %403 = vmatprep.subr.mxu0 0.0
      %404 = vmatpush1.msra.mxu0 0.0
      %405 = vmatprep.subr.mxu0 0.0
      %406 = vmatpush1.msra.mxu0 0.0
      %407 = vmatprep.subr.mxu0 0.0
      %408 = vmatpush1.msra.mxu0 0.0
      %409 = vmatprep.subr.mxu0 0.0
      %410 = vmatpush1.msra.mxu0 0.0
      %411 = vmatprep.subr.mxu0 0.0
      %412 = vmatpush1.msra.mxu0 0.0
      %413 = vmatprep.subr.mxu0 0.0
      %414 = vmatpush1.msra.mxu0 0.0
      %415 = vmatprep.subr.mxu0 0.0
      %416 = vmatpush1.msra.mxu0 0.0
      %417 = vmatprep.subr.mxu0 0.0
      %418 = vmatpush1.msra.mxu0 0.0
      %419 = vmatprep.subr.mxu0 0.0
      %420 = vmatpush1.msra.mxu0 0.0
      %421 = vmatprep.subr.mxu0 0.0
      %422 = vmatpush1.msra.mxu0 0.0
      %423 = vmatprep.subr.mxu0 0.0
      %424 = vmatpush1.msra.mxu0 0.0
      %425 = vmatprep.subr.mxu0 0.0
      %426 = vmatpush1.msra.mxu0 0.0
      %427 = vmatprep.subr.mxu0 0.0
      %428 = vmatpush1.msra.mxu0 0.0
      %429 = vmatprep.subr.mxu0 0.0
      %430 = vmatpush1.msra.mxu0 0.0
      %431 = vmatprep.subr.mxu0 0.0
      %432 = vmatpush1.msra.mxu0 0.0
      %433 = vmatprep.subr.mxu0 0.0
      %434 = vmatpush1.msra.mxu0 0.0
      %435 = vmatprep.subr.mxu0 0.0
      %436 = vmatpush1.msra.mxu0 0.0
      %437 = vmatprep.subr.mxu0 0.0
      %438 = vmatpush1.msra.mxu0 0.0
      %439 = vmatprep.subr.mxu0 0.0
      %440 = vmatpush1.msra.mxu0 0.0
      %441 = vmatprep.subr.mxu0 0.0
      %442 = vmatpush1.msra.mxu0 0.0
      %443 = vmatprep.mubr.f32.mxu0 0.0
      %444 = vmatmul.mubr.f32.gmra.mrb[0].mxu0 %v356
      %v445 = vpop.f32.mrb[0].mxu0
      %v446 = vadd.f32 %v352, %v445
      %v447 = vpop.f32.mrb[0].mxu0
      %448 = vmatprep.mubr.f32.mxu0 0.0
      %449 = vmatmul.mubr.f32.gmra.mrb[0].mxu0 %v359
      %v450 = vpop.f32.mrb[0].mxu0
      %v451 = vadd.f32 %v352, %v450
      %v452 = vpop.f32.mrb[0].mxu0
      %453 = vmatprep.mubr.f32.mxu0 0.0
      %454 = vmatmul.mubr.f32.gmra.mrb[0].mxu0 %v362
      %v455 = vpop.f32.mrb[0].mxu0
      %v456 = vadd.f32 %v352, %v455
      %v457 = vpop.f32.mrb[0].mxu0
      %458 = vmatprep.mubr.f32.mxu0 0.0
      %459 = vmatmul.mubr.f32.gmra.mrb[0].mxu0 %v365
      %v460 = vpop.f32.mrb[0].mxu0
      %v461 = vadd.f32 %v352, %v460
      %v462 = vpop.f32.mrb[0].mxu0
      %463 = vmatprep.mubr.f32.mxu0 0.0
      %464 = vmatmul.mubr.f32.gmra.mrb[0].mxu0 %v368
      %v465 = vpop.f32.mrb[0].mxu0
      %v466 = vadd.f32 %v352, %v465
      %v467 = vpop.f32.mrb[0].mxu0
      %468 = vmatprep.mubr.f32.mxu0 0.0
      %469 = vmatmul.mubr.f32.gmra.mrb[0].mxu0 %v371
      %v470 = vpop.f32.mrb[0].mxu0
      %v471 = vadd.f32 %v352, %v470
      %v472 = vpop.f32.mrb[0].mxu0
      %473 = vmatprep.mubr.f32.mxu0 0.0
      %474 = vmatmul.mubr.f32.gmra.mrb[0].mxu0 %v374
      %v475 = vpop.f32.mrb[0].mxu0
      %v476 = vadd.f32 %v352, %v475
      %v477 = vpop.f32.mrb[0].mxu0
      %478 = vmatprep.mubr.f32.mxu0 0.0
      %479 = vmatmul.mubr.f32.gmra.mrb[0].mxu0 %v377
      %v480 = vpop.f32.mrb[0].mxu0
      %v481 = vadd.f32 %v352, %v480
      %v482 = vpop.f32.mrb[0].mxu0
      %483 = vdwg.mxu0
      %v484 = vld [vmem:[%s324] sm:$0xff]
      %v485 = vld [vmem:[%s324 + $0x8] sm:$0xff]
      %v486 = vld [vmem:[%s324 + $0x10] sm:$0xff]
      %v487 = vld [vmem:[%s324 + $0x18] sm:$0xff]
      %v488 = vld [vmem:[%s330] sm:$0x1]
      %v489 = vld [vmem:[%s314] sm:$0xff]
      %v491 = vlaneseq
      %v492 = vshrl.u32 %v491, 7
      %v493 = vsub.s32 0, %v492
      %v494 = vrot.slane %v488, %v493
      %v497 = vsel %vm354, 0.0, 0
      %499 = vmatprep.subr.mxu0 0.0
      %500 = vmatpush1.msra.mxu0 %v484
      %501 = vmatprep.subr.mxu0 0.0
      %502 = vmatpush1.msra.mxu0 %v485
      %503 = vmatprep.subr.mxu0 0.0
      %504 = vmatpush1.msra.mxu0 %v486
      %505 = vmatprep.subr.mxu0 0.0
      %506 = vmatpush1.msra.mxu0 %v487
      %507 = vmatprep.subr.mxu0 0.0
      %508 = vmatpush1.msra.mxu0 0.0
      %509 = vmatprep.subr.mxu0 0.0
      %510 = vmatpush1.msra.mxu0 0.0
      %511 = vmatprep.subr.mxu0 0.0
      %512 = vmatpush1.msra.mxu0 0.0
      %513 = vmatprep.subr.mxu0 0.0
      %514 = vmatpush1.msra.mxu0 0.0
      %515 = vmatprep.subr.mxu0 0.0
      %516 = vmatpush1.msra.mxu0 0.0
      %517 = vmatprep.subr.mxu0 0.0
      %518 = vmatpush1.msra.mxu0 0.0
      %519 = vmatprep.subr.mxu0 0.0
      %520 = vmatpush1.msra.mxu0 0.0
      %521 = vmatprep.subr.mxu0 0.0
      %522 = vmatpush1.msra.mxu0 0.0
      %523 = vmatprep.subr.mxu0 0.0
      %524 = vmatpush1.msra.mxu0 0.0
      %525 = vmatprep.subr.mxu0 0.0
      %526 = vmatpush1.msra.mxu0 0.0
      %527 = vmatprep.subr.mxu0 0.0
      %528 = vmatpush1.msra.mxu0 0.0
      %529 = vmatprep.subr.mxu0 0.0
      %530 = vmatpush1.msra.mxu0 0.0
      %531 = vmatprep.subr.mxu0 0.0
      %532 = vmatpush1.msra.mxu0 0.0
      %533 = vmatprep.subr.mxu0 0.0
      %534 = vmatpush1.msra.mxu0 0.0
      %535 = vmatprep.subr.mxu0 0.0
      %536 = vmatpush1.msra.mxu0 0.0
      %537 = vmatprep.subr.mxu0 0.0
      %538 = vmatpush1.msra.mxu0 0.0
      %539 = vmatprep.subr.mxu0 0.0
      %540 = vmatpush1.msra.mxu0 0.0
      %541 = vmatprep.subr.mxu0 0.0
      %542 = vmatpush1.msra.mxu0 0.0
      %543 = vmatprep.subr.mxu0 0.0
      %544 = vmatpush1.msra.mxu0 0.0
      %545 = vmatprep.subr.mxu0 0.0
      %546 = vmatpush1.msra.mxu0 0.0
      %547 = vmatprep.subr.mxu0 0.0
      %548 = vmatpush1.msra.mxu0 0.0
      %549 = vmatprep.subr.mxu0 0.0
      %550 = vmatpush1.msra.mxu0 0.0
      %551 = vmatprep.subr.mxu0 0.0
      %552 = vmatpush1.msra.mxu0 0.0
      %553 = vmatprep.subr.mxu0 0.0
      %554 = vmatpush1.msra.mxu0 0.0
      %555 = vmatprep.subr.mxu0 0.0
      %556 = vmatpush1.msra.mxu0 0.0
      %557 = vmatprep.subr.mxu0 0.0
      %558 = vmatpush1.msra.mxu0 0.0
      %559 = vmatprep.subr.mxu0 0.0
      %560 = vmatpush1.msra.mxu0 0.0
      %561 = vmatprep.subr.mxu0 0.0
      %562 = vmatpush1.msra.mxu0 0.0
      %563 = vmatprep.mubr.f32.mxu0 0.0
      %564 = vmatmul.mubr.f32.gmra.mrb[0].mxu0 %v497
      %v565 = vpop.f32.mrb[0].mxu0
      %v566 = vadd.f32 %v494, %v565
      %v567 = vpop.f32.mrb[0].mxu0
      %568 = vdwg.mxu0
      %v569 = vadd.f32 %v446, %v566
      %v570 = vxor.u32 %v569, 2147483648
      %v571 = vmul.f32 %v570, 1.442695
      %v572 = vpow.pop %v571
      %v573 = vadd.f32 %v572, 1.0
      %v574 = vrcp.pop %v573
      %v575 = vmul.f32 1.0, %v574
      %577 = vrot.lane.b32.xlu0 %v566, 64
      %v578 = vpop.permute.xlu0 %577
      %v580 = vmul.f32 %v575, %v578
      %582 = vrot.lane.b32.xlu0 %v580, 64
      %v583 = vpop.permute.xlu0 %582
      %v585 = vadd.f32 %v446, %v583
      %v586 = vtanh.pop %v585
      %v587 = vsub.f32 1.0, %v575
      %589 = vrot.lane.b32.xlu0 %v586, 96
      %v590 = vpop.permute.xlu0 %589
      %v592 = vmul.f32 %v587, %v590
      %v593 = vmul.f32 %v575, 0.0
      %v594 = vadd.f32 %v592, %v593
      %vm595 = vcmp.eq.s32.totalorder %v489, 0
      %v596 = vsel %vm595, 1, 0
      %597 = vset.pattern.permute.xlu0 0
      %598 = vperm.xlu0 %597, %v596
      %v599 = vpop.permute.xlu0 %598
      %vm600 = vcmp.eq.s32.totalorder %v599, 1
      %v601 = vsel %vm600, %v594, 0.0
      %603 = vrot.lane.b32.xlu0 %v594, 96
      %v604 = vpop.permute.xlu0 %603
      %v605 = vsel %vm354, %v604, 0
      %607 = vmatprep.subr.mxu0 0.0
      %608 = vmatpush1.msra.mxu0 %v484
      %609 = vmatprep.subr.mxu0 0.0
      %610 = vmatpush1.msra.mxu0 %v485
      %611 = vmatprep.subr.mxu0 0.0
      %612 = vmatpush1.msra.mxu0 %v486
      %613 = vmatprep.subr.mxu0 0.0
      %614 = vmatpush1.msra.mxu0 %v487
      %615 = vmatprep.subr.mxu0 0.0
      %616 = vmatpush1.msra.mxu0 0.0
      %617 = vmatprep.subr.mxu0 0.0
      %618 = vmatpush1.msra.mxu0 0.0
      %619 = vmatprep.subr.mxu0 0.0
      %620 = vmatpush1.msra.mxu0 0.0
      %621 = vmatprep.subr.mxu0 0.0
      %622 = vmatpush1.msra.mxu0 0.0
      %623 = vmatprep.subr.mxu0 0.0
      %624 = vmatpush1.msra.mxu0 0.0
      %625 = vmatprep.subr.mxu0 0.0
      %626 = vmatpush1.msra.mxu0 0.0
      %627 = vmatprep.subr.mxu0 0.0
      %628 = vmatpush1.msra.mxu0 0.0
      %629 = vmatprep.subr.mxu0 0.0
      %630 = vmatpush1.msra.mxu0 0.0
      %631 = vmatprep.subr.mxu0 0.0
      %632 = vmatpush1.msra.mxu0 0.0
      %633 = vmatprep.subr.mxu0 0.0
      %634 = vmatpush1.msra.mxu0 0.0
      %635 = vmatprep.subr.mxu0 0.0
      %636 = vmatpush1.msra.mxu0 0.0
      %637 = vmatprep.subr.mxu0 0.0
      %638 = vmatpush1.msra.mxu0 0.0
      %639 = vmatprep.subr.mxu0 0.0
      %640 = vmatpush1.msra.mxu0 0.0
      %641 = vmatprep.subr.mxu0 0.0
      %642 = vmatpush1.msra.mxu0 0.0
      %643 = vmatprep.subr.mxu0 0.0
      %644 = vmatpush1.msra.mxu0 0.0
      %645 = vmatprep.subr.mxu0 0.0
      %646 = vmatpush1.msra.mxu0 0.0
      %647 = vmatprep.subr.mxu0 0.0
      %648 = vmatpush1.msra.mxu0 0.0
      %649 = vmatprep.subr.mxu0 0.0
      %650 = vmatpush1.msra.mxu0 0.0
      %651 = vmatprep.subr.mxu0 0.0
      %652 = vmatpush1.msra.mxu0 0.0
      %653 = vmatprep.subr.mxu0 0.0
      %654 = vmatpush1.msra.mxu0 0.0
      %655 = vmatprep.subr.mxu0 0.0
      %656 = vmatpush1.msra.mxu0 0.0
      %657 = vmatprep.subr.mxu0 0.0
      %658 = vmatpush1.msra.mxu0 0.0
      %659 = vmatprep.subr.mxu0 0.0
      %660 = vmatpush1.msra.mxu0 0.0
      %661 = vmatprep.subr.mxu0 0.0
      %662 = vmatpush1.msra.mxu0 0.0
      %663 = vmatprep.subr.mxu0 0.0
      %664 = vmatpush1.msra.mxu0 0.0
      %665 = vmatprep.subr.mxu0 0.0
      %666 = vmatpush1.msra.mxu0 0.0
      %667 = vmatprep.subr.mxu0 0.0
      %668 = vmatpush1.msra.mxu0 0.0
      %669 = vmatprep.subr.mxu0 0.0
      %670 = vmatpush1.msra.mxu0 0.0
      %671 = vmatprep.mubr.f32.mxu0 0.0
      %672 = vmatmul.mubr.f32.gmra.mrb[0].mxu0 %v605
      %v673 = vpop.f32.mrb[0].mxu0
      %v674 = vadd.f32 %v494, %v673
      %v675 = vpop.f32.mrb[0].mxu0
      %676 = vdwg.mxu0
      %v677 = vadd.f32 %v451, %v674
      %v678 = vxor.u32 %v677, 2147483648
      %v679 = vmul.f32 %v678, 1.442695
      %v680 = vpow.pop %v679
      %v681 = vadd.f32 %v680, 1.0
      %v682 = vrcp.pop %v681
      %v683 = vmul.f32 1.0, %v682
      %685 = vrot.lane.b32.xlu0 %v674, 64
      %v686 = vpop.permute.xlu0 %685
      %v688 = vmul.f32 %v683, %v686
      %690 = vrot.lane.b32.xlu0 %v688, 64
      %v691 = vpop.permute.xlu0 %690
      %v693 = vadd.f32 %v451, %v691
      %v694 = vtanh.pop %v693
      %v695 = vsub.f32 1.0, %v683
      %697 = vrot.lane.b32.xlu0 %v694, 96
      %v698 = vpop.permute.xlu0 %697
      %v700 = vmul.f32 %v695, %v698
      %v701 = vmul.f32 %v683, %v594
      %v702 = vadd.f32 %v700, %v701
      %vm703 = vcmp.eq.s32.totalorder %v489, 1
      %v704 = vsel %vm703, 1, 0
      %705 = vset.pattern.permute.xlu0 0
      %706 = vperm.xlu0 %705, %v704
      %v707 = vpop.permute.xlu0 %706
      %vm708 = vcmp.eq.s32.totalorder %v707, 1
      %v709 = vsel %vm708, %v702, %v601
      %711 = vrot.lane.b32.xlu0 %v702, 96
      %v712 = vpop.permute.xlu0 %711
      %v713 = vsel %vm354, %v712, 0
      %715 = vmatprep.subr.mxu0 0.0
      %716 = vmatpush1.msra.mxu0 %v484
      %717 = vmatprep.subr.mxu0 0.0
      %718 = vmatpush1.msra.mxu0 %v485
      %719 = vmatprep.subr.mxu0 0.0
      %720 = vmatpush1.msra.mxu0 %v486
      %721 = vmatprep.subr.mxu0 0.0
      %722 = vmatpush1.msra.mxu0 %v487
      %723 = vmatprep.subr.mxu0 0.0
      %724 = vmatpush1.msra.mxu0 0.0
      %725 = vmatprep.subr.mxu0 0.0
      %726 = vmatpush1.msra.mxu0 0.0
      %727 = vmatprep.subr.mxu0 0.0
      %728 = vmatpush1.msra.mxu0 0.0
      %729 = vmatprep.subr.mxu0 0.0
      %730 = vmatpush1.msra.mxu0 0.0
      %731 = vmatprep.subr.mxu0 0.0
      %732 = vmatpush1.msra.mxu0 0.0
      %733 = vmatprep.subr.mxu0 0.0
      %734 = vmatpush1.msra.mxu0 0.0
      %735 = vmatprep.subr.mxu0 0.0
      %736 = vmatpush1.msra.mxu0 0.0
      %737 = vmatprep.subr.mxu0 0.0
      %738 = vmatpush1.msra.mxu0 0.0
      %739 = vmatprep.subr.mxu0 0.0
      %740 = vmatpush1.msra.mxu0 0.0
      %741 = vmatprep.subr.mxu0 0.0
      %742 = vmatpush1.msra.mxu0 0.0
      %743 = vmatprep.subr.mxu0 0.0
      %744 = vmatpush1.msra.mxu0 0.0
      %745 = vmatprep.subr.mxu0 0.0
      %746 = vmatpush1.msra.mxu0 0.0
      %747 = vmatprep.subr.mxu0 0.0
      %748 = vmatpush1.msra.mxu0 0.0
      %749 = vmatprep.subr.mxu0 0.0
      %750 = vmatpush1.msra.mxu0 0.0
      %751 = vmatprep.subr.mxu0 0.0
      %752 = vmatpush1.msra.mxu0 0.0
      %753 = vmatprep.subr.mxu0 0.0
      %754 = vmatpush1.msra.mxu0 0.0
      %755 = vmatprep.subr.mxu0 0.0
      %756 = vmatpush1.msra.mxu0 0.0
      %757 = vmatprep.subr.mxu0 0.0
      %758 = vmatpush1.msra.mxu0 0.0
      %759 = vmatprep.subr.mxu0 0.0
      %760 = vmatpush1.msra.mxu0 0.0
      %761 = vmatprep.subr.mxu0 0.0
      %762 = vmatpush1.msra.mxu0 0.0
      %763 = vmatprep.subr.mxu0 0.0
      %764 = vmatpush1.msra.mxu0 0.0
      %765 = vmatprep.subr.mxu0 0.0
      %766 = vmatpush1.msra.mxu0 0.0
      %767 = vmatprep.subr.mxu0 0.0
      %768 = vmatpush1.msra.mxu0 0.0
      %769 = vmatprep.subr.mxu0 0.0
      %770 = vmatpush1.msra.mxu0 0.0
      %771 = vmatprep.subr.mxu0 0.0
      %772 = vmatpush1.msra.mxu0 0.0
      %773 = vmatprep.subr.mxu0 0.0
      %774 = vmatpush1.msra.mxu0 0.0
      %775 = vmatprep.subr.mxu0 0.0
      %776 = vmatpush1.msra.mxu0 0.0
      %777 = vmatprep.subr.mxu0 0.0
      %778 = vmatpush1.msra.mxu0 0.0
      %779 = vmatprep.mubr.f32.mxu0 0.0
      %780 = vmatmul.mubr.f32.gmra.mrb[0].mxu0 %v713
      %v781 = vpop.f32.mrb[0].mxu0
      %v782 = vadd.f32 %v494, %v781
      %v783 = vpop.f32.mrb[0].mxu0
      %784 = vdwg.mxu0
      %v785 = vadd.f32 %v456, %v782
      %v786 = vxor.u32 %v785, 2147483648
      %v787 = vmul.f32 %v786, 1.442695
      %v788 = vpow.pop %v787
      %v789 = vadd.f32 %v788, 1.0
      %v790 = vrcp.pop %v789
      %v791 = vmul.f32 1.0, %v790
      %793 = vrot.lane.b32.xlu0 %v782, 64
      %v794 = vpop.permute.xlu0 %793
      %v796 = vmul.f32 %v791, %v794
      %798 = vrot.lane.b32.xlu0 %v796, 64
      %v799 = vpop.permute.xlu0 %798
      %v801 = vadd.f32 %v456, %v799
      %v802 = vtanh.pop %v801
      %v803 = vsub.f32 1.0, %v791
      %805 = vrot.lane.b32.xlu0 %v802, 96
      %v806 = vpop.permute.xlu0 %805
      %v808 = vmul.f32 %v803, %v806
      %v809 = vmul.f32 %v791, %v702
      %v810 = vadd.f32 %v808, %v809
      %vm811 = vcmp.eq.s32.totalorder %v489, 2
      %v812 = vsel %vm811, 1, 0
      %813 = vset.pattern.permute.xlu0 0
      %814 = vperm.xlu0 %813, %v812
      %v815 = vpop.permute.xlu0 %814
      %vm816 = vcmp.eq.s32.totalorder %v815, 1
      %v817 = vsel %vm816, %v810, %v709
      %819 = vrot.lane.b32.xlu0 %v810, 96
      %v820 = vpop.permute.xlu0 %819
      %v821 = vsel %vm354, %v820, 0
      %823 = vmatprep.subr.mxu0 0.0
      %824 = vmatpush1.msra.mxu0 %v484
      %825 = vmatprep.subr.mxu0 0.0
      %826 = vmatpush1.msra.mxu0 %v485
      %827 = vmatprep.subr.mxu0 0.0
      %828 = vmatpush1.msra.mxu0 %v486
      %829 = vmatprep.subr.mxu0 0.0
      %830 = vmatpush1.msra.mxu0 %v487
      %831 = vmatprep.subr.mxu0 0.0
      %832 = vmatpush1.msra.mxu0 0.0
      %833 = vmatprep.subr.mxu0 0.0
      %834 = vmatpush1.msra.mxu0 0.0
      %835 = vmatprep.subr.mxu0 0.0
      %836 = vmatpush1.msra.mxu0 0.0
      %837 = vmatprep.subr.mxu0 0.0
      %838 = vmatpush1.msra.mxu0 0.0
      %839 = vmatprep.subr.mxu0 0.0
      %840 = vmatpush1.msra.mxu0 0.0
      %841 = vmatprep.subr.mxu0 0.0
      %842 = vmatpush1.msra.mxu0 0.0
      %843 = vmatprep.subr.mxu0 0.0
      %844 = vmatpush1.msra.mxu0 0.0
      %845 = vmatprep.subr.mxu0 0.0
      %846 = vmatpush1.msra.mxu0 0.0
      %847 = vmatprep.subr.mxu0 0.0
      %848 = vmatpush1.msra.mxu0 0.0
      %849 = vmatprep.subr.mxu0 0.0
      %850 = vmatpush1.msra.mxu0 0.0
      %851 = vmatprep.subr.mxu0 0.0
      %852 = vmatpush1.msra.mxu0 0.0
      %853 = vmatprep.subr.mxu0 0.0
      %854 = vmatpush1.msra.mxu0 0.0
      %855 = vmatprep.subr.mxu0 0.0
      %856 = vmatpush1.msra.mxu0 0.0
      %857 = vmatprep.subr.mxu0 0.0
      %858 = vmatpush1.msra.mxu0 0.0
      %859 = vmatprep.subr.mxu0 0.0
      %860 = vmatpush1.msra.mxu0 0.0
      %861 = vmatprep.subr.mxu0 0.0
      %862 = vmatpush1.msra.mxu0 0.0
      %863 = vmatprep.subr.mxu0 0.0
      %864 = vmatpush1.msra.mxu0 0.0
      %865 = vmatprep.subr.mxu0 0.0
      %866 = vmatpush1.msra.mxu0 0.0
      %867 = vmatprep.subr.mxu0 0.0
      %868 = vmatpush1.msra.mxu0 0.0
      %869 = vmatprep.subr.mxu0 0.0
      %870 = vmatpush1.msra.mxu0 0.0
      %871 = vmatprep.subr.mxu0 0.0
      %872 = vmatpush1.msra.mxu0 0.0
      %873 = vmatprep.subr.mxu0 0.0
      %874 = vmatpush1.msra.mxu0 0.0
      %875 = vmatprep.subr.mxu0 0.0
      %876 = vmatpush1.msra.mxu0 0.0
      %877 = vmatprep.subr.mxu0 0.0
      %878 = vmatpush1.msra.mxu0 0.0
      %879 = vmatprep.subr.mxu0 0.0
      %880 = vmatpush1.msra.mxu0 0.0
      %881 = vmatprep.subr.mxu0 0.0
      %882 = vmatpush1.msra.mxu0 0.0
      %883 = vmatprep.subr.mxu0 0.0
      %884 = vmatpush1.msra.mxu0 0.0
      %885 = vmatprep.subr.mxu0 0.0
      %886 = vmatpush1.msra.mxu0 0.0
      %887 = vmatprep.mubr.f32.mxu0 0.0
      %888 = vmatmul.mubr.f32.gmra.mrb[0].mxu0 %v821
      %v889 = vpop.f32.mrb[0].mxu0
      %v890 = vadd.f32 %v494, %v889
      %v891 = vpop.f32.mrb[0].mxu0
      %892 = vdwg.mxu0
      %v893 = vadd.f32 %v461, %v890
      %v894 = vxor.u32 %v893, 2147483648
      %v895 = vmul.f32 %v894, 1.442695
      %v896 = vpow.pop %v895
      %v897 = vadd.f32 %v896, 1.0
      %v898 = vrcp.pop %v897
      %v899 = vmul.f32 1.0, %v898
      %901 = vrot.lane.b32.xlu0 %v890, 64
      %v902 = vpop.permute.xlu0 %901
      %v904 = vmul.f32 %v899, %v902
      %906 = vrot.lane.b32.xlu0 %v904, 64
      %v907 = vpop.permute.xlu0 %906
      %v909 = vadd.f32 %v461, %v907
      %v910 = vtanh.pop %v909
      %v911 = vsub.f32 1.0, %v899
      %913 = vrot.lane.b32.xlu0 %v910, 96
      %v914 = vpop.permute.xlu0 %913
      %v916 = vmul.f32 %v911, %v914
      %v917 = vmul.f32 %v899, %v810
      %v918 = vadd.f32 %v916, %v917
      %vm919 = vcmp.eq.s32.totalorder %v489, 3
      %v920 = vsel %vm919, 1, 0
      %921 = vset.pattern.permute.xlu0 0
      %922 = vperm.xlu0 %921, %v920
      %v923 = vpop.permute.xlu0 %922
      %vm924 = vcmp.eq.s32.totalorder %v923, 1
      %v925 = vsel %vm924, %v918, %v817
      %927 = vrot.lane.b32.xlu0 %v918, 96
      %v928 = vpop.permute.xlu0 %927
      %v929 = vsel %vm354, %v928, 0
      %931 = vmatprep.subr.mxu0 0.0
      %932 = vmatpush1.msra.mxu0 %v484
      %933 = vmatprep.subr.mxu0 0.0
      %934 = vmatpush1.msra.mxu0 %v485
      %935 = vmatprep.subr.mxu0 0.0
      %936 = vmatpush1.msra.mxu0 %v486
      %937 = vmatprep.subr.mxu0 0.0
      %938 = vmatpush1.msra.mxu0 %v487
      %939 = vmatprep.subr.mxu0 0.0
      %940 = vmatpush1.msra.mxu0 0.0
      %941 = vmatprep.subr.mxu0 0.0
      %942 = vmatpush1.msra.mxu0 0.0
      %943 = vmatprep.subr.mxu0 0.0
      %944 = vmatpush1.msra.mxu0 0.0
      %945 = vmatprep.subr.mxu0 0.0
      %946 = vmatpush1.msra.mxu0 0.0
      %947 = vmatprep.subr.mxu0 0.0
      %948 = vmatpush1.msra.mxu0 0.0
      %949 = vmatprep.subr.mxu0 0.0
      %950 = vmatpush1.msra.mxu0 0.0
      %951 = vmatprep.subr.mxu0 0.0
      %952 = vmatpush1.msra.mxu0 0.0
      %953 = vmatprep.subr.mxu0 0.0
      %954 = vmatpush1.msra.mxu0 0.0
      %955 = vmatprep.subr.mxu0 0.0
      %956 = vmatpush1.msra.mxu0 0.0
      %957 = vmatprep.subr.mxu0 0.0
      %958 = vmatpush1.msra.mxu0 0.0
      %959 = vmatprep.subr.mxu0 0.0
      %960 = vmatpush1.msra.mxu0 0.0
      %961 = vmatprep.subr.mxu0 0.0
      %962 = vmatpush1.msra.mxu0 0.0
      %963 = vmatprep.subr.mxu0 0.0
      %964 = vmatpush1.msra.mxu0 0.0
      %965 = vmatprep.subr.mxu0 0.0
      %966 = vmatpush1.msra.mxu0 0.0
      %967 = vmatprep.subr.mxu0 0.0
      %968 = vmatpush1.msra.mxu0 0.0
      %969 = vmatprep.subr.mxu0 0.0
      %970 = vmatpush1.msra.mxu0 0.0
      %971 = vmatprep.subr.mxu0 0.0
      %972 = vmatpush1.msra.mxu0 0.0
      %973 = vmatprep.subr.mxu0 0.0
      %974 = vmatpush1.msra.mxu0 0.0
      %975 = vmatprep.subr.mxu0 0.0
      %976 = vmatpush1.msra.mxu0 0.0
      %977 = vmatprep.subr.mxu0 0.0
      %978 = vmatpush1.msra.mxu0 0.0
      %979 = vmatprep.subr.mxu0 0.0
      %980 = vmatpush1.msra.mxu0 0.0
      %981 = vmatprep.subr.mxu0 0.0
      %982 = vmatpush1.msra.mxu0 0.0
      %983 = vmatprep.subr.mxu0 0.0
      %984 = vmatpush1.msra.mxu0 0.0
      %985 = vmatprep.subr.mxu0 0.0
      %986 = vmatpush1.msra.mxu0 0.0
      %987 = vmatprep.subr.mxu0 0.0
      %988 = vmatpush1.msra.mxu0 0.0
      %989 = vmatprep.subr.mxu0 0.0
      %990 = vmatpush1.msra.mxu0 0.0
      %991 = vmatprep.subr.mxu0 0.0
      %992 = vmatpush1.msra.mxu0 0.0
      %993 = vmatprep.subr.mxu0 0.0
      %994 = vmatpush1.msra.mxu0 0.0
      %995 = vmatprep.mubr.f32.mxu0 0.0
      %996 = vmatmul.mubr.f32.gmra.mrb[0].mxu0 %v929
      %v997 = vpop.f32.mrb[0].mxu0
      %v998 = vadd.f32 %v494, %v997
      %v999 = vpop.f32.mrb[0].mxu0
      %1000 = vdwg.mxu0
      %v1001 = vadd.f32 %v466, %v998
      %v1002 = vxor.u32 %v1001, 2147483648
      %v1003 = vmul.f32 %v1002, 1.442695
      %v1004 = vpow.pop %v1003
      %v1005 = vadd.f32 %v1004, 1.0
      %v1006 = vrcp.pop %v1005
      %v1007 = vmul.f32 1.0, %v1006
      %1009 = vrot.lane.b32.xlu0 %v998, 64
      %v1010 = vpop.permute.xlu0 %1009
      %v1012 = vmul.f32 %v1007, %v1010
      %1014 = vrot.lane.b32.xlu0 %v1012, 64
      %v1015 = vpop.permute.xlu0 %1014
      %v1017 = vadd.f32 %v466, %v1015
      %v1018 = vtanh.pop %v1017
      %v1019 = vsub.f32 1.0, %v1007
      %1021 = vrot.lane.b32.xlu0 %v1018, 96
      %v1022 = vpop.permute.xlu0 %1021
      %v1024 = vmul.f32 %v1019, %v1022
      %v1025 = vmul.f32 %v1007, %v918
      %v1026 = vadd.f32 %v1024, %v1025
      %vm1027 = vcmp.eq.s32.totalorder %v489, 4
      %v1028 = vsel %vm1027, 1, 0
      %1029 = vset.pattern.permute.xlu0 0
      %1030 = vperm.xlu0 %1029, %v1028
      %v1031 = vpop.permute.xlu0 %1030
      %vm1032 = vcmp.eq.s32.totalorder %v1031, 1
      %v1033 = vsel %vm1032, %v1026, %v925
      %1035 = vrot.lane.b32.xlu0 %v1026, 96
      %v1036 = vpop.permute.xlu0 %1035
      %v1037 = vsel %vm354, %v1036, 0
      %1039 = vmatprep.subr.mxu0 0.0
      %1040 = vmatpush1.msra.mxu0 %v484
      %1041 = vmatprep.subr.mxu0 0.0
      %1042 = vmatpush1.msra.mxu0 %v485
      %1043 = vmatprep.subr.mxu0 0.0
      %1044 = vmatpush1.msra.mxu0 %v486
      %1045 = vmatprep.subr.mxu0 0.0
      %1046 = vmatpush1.msra.mxu0 %v487
      %1047 = vmatprep.subr.mxu0 0.0
      %1048 = vmatpush1.msra.mxu0 0.0
      %1049 = vmatprep.subr.mxu0 0.0
      %1050 = vmatpush1.msra.mxu0 0.0
      %1051 = vmatprep.subr.mxu0 0.0
      %1052 = vmatpush1.msra.mxu0 0.0
      %1053 = vmatprep.subr.mxu0 0.0
      %1054 = vmatpush1.msra.mxu0 0.0
      %1055 = vmatprep.subr.mxu0 0.0
      %1056 = vmatpush1.msra.mxu0 0.0
      %1057 = vmatprep.subr.mxu0 0.0
      %1058 = vmatpush1.msra.mxu0 0.0
      %1059 = vmatprep.subr.mxu0 0.0
      %1060 = vmatpush1.msra.mxu0 0.0
      %1061 = vmatprep.subr.mxu0 0.0
      %1062 = vmatpush1.msra.mxu0 0.0
      %1063 = vmatprep.subr.mxu0 0.0
      %1064 = vmatpush1.msra.mxu0 0.0
      %1065 = vmatprep.subr.mxu0 0.0
      %1066 = vmatpush1.msra.mxu0 0.0
      %1067 = vmatprep.subr.mxu0 0.0
      %1068 = vmatpush1.msra.mxu0 0.0
      %1069 = vmatprep.subr.mxu0 0.0
      %1070 = vmatpush1.msra.mxu0 0.0
      %1071 = vmatprep.subr.mxu0 0.0
      %1072 = vmatpush1.msra.mxu0 0.0
      %1073 = vmatprep.subr.mxu0 0.0
      %1074 = vmatpush1.msra.mxu0 0.0
      %1075 = vmatprep.subr.mxu0 0.0
      %1076 = vmatpush1.msra.mxu0 0.0
      %1077 = vmatprep.subr.mxu0 0.0
      %1078 = vmatpush1.msra.mxu0 0.0
      %1079 = vmatprep.subr.mxu0 0.0
      %1080 = vmatpush1.msra.mxu0 0.0
      %1081 = vmatprep.subr.mxu0 0.0
      %1082 = vmatpush1.msra.mxu0 0.0
      %1083 = vmatprep.subr.mxu0 0.0
      %1084 = vmatpush1.msra.mxu0 0.0
      %1085 = vmatprep.subr.mxu0 0.0
      %1086 = vmatpush1.msra.mxu0 0.0
      %1087 = vmatprep.subr.mxu0 0.0
      %1088 = vmatpush1.msra.mxu0 0.0
      %1089 = vmatprep.subr.mxu0 0.0
      %1090 = vmatpush1.msra.mxu0 0.0
      %1091 = vmatprep.subr.mxu0 0.0
      %1092 = vmatpush1.msra.mxu0 0.0
      %1093 = vmatprep.subr.mxu0 0.0
      %1094 = vmatpush1.msra.mxu0 0.0
      %1095 = vmatprep.subr.mxu0 0.0
      %1096 = vmatpush1.msra.mxu0 0.0
      %1097 = vmatprep.subr.mxu0 0.0
      %1098 = vmatpush1.msra.mxu0 0.0
      %1099 = vmatprep.subr.mxu0 0.0
      %1100 = vmatpush1.msra.mxu0 0.0
      %1101 = vmatprep.subr.mxu0 0.0
      %1102 = vmatpush1.msra.mxu0 0.0
      %1103 = vmatprep.mubr.f32.mxu0 0.0
      %1104 = vmatmul.mubr.f32.gmra.mrb[0].mxu0 %v1037
      %v1105 = vpop.f32.mrb[0].mxu0
      %v1106 = vadd.f32 %v494, %v1105
      %v1107 = vpop.f32.mrb[0].mxu0
      %1108 = vdwg.mxu0
      %v1109 = vadd.f32 %v471, %v1106
      %v1110 = vxor.u32 %v1109, 2147483648
      %v1111 = vmul.f32 %v1110, 1.442695
      %v1112 = vpow.pop %v1111
      %v1113 = vadd.f32 %v1112, 1.0
      %v1114 = vrcp.pop %v1113
      %v1115 = vmul.f32 1.0, %v1114
      %1117 = vrot.lane.b32.xlu0 %v1106, 64
      %v1118 = vpop.permute.xlu0 %1117
      %v1120 = vmul.f32 %v1115, %v1118
      %1122 = vrot.lane.b32.xlu0 %v1120, 64
      %v1123 = vpop.permute.xlu0 %1122
      %v1125 = vadd.f32 %v471, %v1123
      %v1126 = vtanh.pop %v1125
      %v1127 = vsub.f32 1.0, %v1115
      %1129 = vrot.lane.b32.xlu0 %v1126, 96
      %v1130 = vpop.permute.xlu0 %1129
      %v1132 = vmul.f32 %v1127, %v1130
      %v1133 = vmul.f32 %v1115, %v1026
      %v1134 = vadd.f32 %v1132, %v1133
      %vm1135 = vcmp.eq.s32.totalorder %v489, 5
      %v1136 = vsel %vm1135, 1, 0
      %1137 = vset.pattern.permute.xlu0 0
      %1138 = vperm.xlu0 %1137, %v1136
      %v1139 = vpop.permute.xlu0 %1138
      %vm1140 = vcmp.eq.s32.totalorder %v1139, 1
      %v1141 = vsel %vm1140, %v1134, %v1033
      %1143 = vrot.lane.b32.xlu0 %v1134, 96
      %v1144 = vpop.permute.xlu0 %1143
      %v1145 = vsel %vm354, %v1144, 0
      %1147 = vmatprep.subr.mxu0 0.0
      %1148 = vmatpush1.msra.mxu0 %v484
      %1149 = vmatprep.subr.mxu0 0.0
      %1150 = vmatpush1.msra.mxu0 %v485
      %1151 = vmatprep.subr.mxu0 0.0
      %1152 = vmatpush1.msra.mxu0 %v486
      %1153 = vmatprep.subr.mxu0 0.0
      %1154 = vmatpush1.msra.mxu0 %v487
      %1155 = vmatprep.subr.mxu0 0.0
      %1156 = vmatpush1.msra.mxu0 0.0
      %1157 = vmatprep.subr.mxu0 0.0
      %1158 = vmatpush1.msra.mxu0 0.0
      %1159 = vmatprep.subr.mxu0 0.0
      %1160 = vmatpush1.msra.mxu0 0.0
      %1161 = vmatprep.subr.mxu0 0.0
      %1162 = vmatpush1.msra.mxu0 0.0
      %1163 = vmatprep.subr.mxu0 0.0
      %1164 = vmatpush1.msra.mxu0 0.0
      %1165 = vmatprep.subr.mxu0 0.0
      %1166 = vmatpush1.msra.mxu0 0.0
      %1167 = vmatprep.subr.mxu0 0.0
      %1168 = vmatpush1.msra.mxu0 0.0
      %1169 = vmatprep.subr.mxu0 0.0
      %1170 = vmatpush1.msra.mxu0 0.0
      %1171 = vmatprep.subr.mxu0 0.0
      %1172 = vmatpush1.msra.mxu0 0.0
      %1173 = vmatprep.subr.mxu0 0.0
      %1174 = vmatpush1.msra.mxu0 0.0
      %1175 = vmatprep.subr.mxu0 0.0
      %1176 = vmatpush1.msra.mxu0 0.0
      %1177 = vmatprep.subr.mxu0 0.0
      %1178 = vmatpush1.msra.mxu0 0.0
      %1179 = vmatprep.subr.mxu0 0.0
      %1180 = vmatpush1.msra.mxu0 0.0
      %1181 = vmatprep.subr.mxu0 0.0
      %1182 = vmatpush1.msra.mxu0 0.0
      %1183 = vmatprep.subr.mxu0 0.0
      %1184 = vmatpush1.msra.mxu0 0.0
      %1185 = vmatprep.subr.mxu0 0.0
      %1186 = vmatpush1.msra.mxu0 0.0
      %1187 = vmatprep.subr.mxu0 0.0
      %1188 = vmatpush1.msra.mxu0 0.0
      %1189 = vmatprep.subr.mxu0 0.0
      %1190 = vmatpush1.msra.mxu0 0.0
      %1191 = vmatprep.subr.mxu0 0.0
      %1192 = vmatpush1.msra.mxu0 0.0
      %1193 = vmatprep.subr.mxu0 0.0
      %1194 = vmatpush1.msra.mxu0 0.0
      %1195 = vmatprep.subr.mxu0 0.0
      %1196 = vmatpush1.msra.mxu0 0.0
      %1197 = vmatprep.subr.mxu0 0.0
      %1198 = vmatpush1.msra.mxu0 0.0
      %1199 = vmatprep.subr.mxu0 0.0
      %1200 = vmatpush1.msra.mxu0 0.0
      %1201 = vmatprep.subr.mxu0 0.0
      %1202 = vmatpush1.msra.mxu0 0.0
      %1203 = vmatprep.subr.mxu0 0.0
      %1204 = vmatpush1.msra.mxu0 0.0
      %1205 = vmatprep.subr.mxu0 0.0
      %1206 = vmatpush1.msra.mxu0 0.0
      %1207 = vmatprep.subr.mxu0 0.0
      %1208 = vmatpush1.msra.mxu0 0.0
      %1209 = vmatprep.subr.mxu0 0.0
      %1210 = vmatpush1.msra.mxu0 0.0
      %1211 = vmatprep.mubr.f32.mxu0 0.0
      %1212 = vmatmul.mubr.f32.gmra.mrb[0].mxu0 %v1145
      %v1213 = vpop.f32.mrb[0].mxu0
      %v1214 = vadd.f32 %v494, %v1213
      %v1215 = vpop.f32.mrb[0].mxu0
      %1216 = vdwg.mxu0
      %v1217 = vadd.f32 %v476, %v1214
      %v1218 = vxor.u32 %v1217, 2147483648
      %v1219 = vmul.f32 %v1218, 1.442695
      %v1220 = vpow.pop %v1219
      %v1221 = vadd.f32 %v1220, 1.0
      %v1222 = vrcp.pop %v1221
      %v1223 = vmul.f32 1.0, %v1222
      %1225 = vrot.lane.b32.xlu0 %v1214, 64
      %v1226 = vpop.permute.xlu0 %1225
      %v1228 = vmul.f32 %v1223, %v1226
      %1230 = vrot.lane.b32.xlu0 %v1228, 64
      %v1231 = vpop.permute.xlu0 %1230
      %v1233 = vadd.f32 %v476, %v1231
      %v1234 = vtanh.pop %v1233
      %v1235 = vsub.f32 1.0, %v1223
      %1237 = vrot.lane.b32.xlu0 %v1234, 96
      %v1238 = vpop.permute.xlu0 %1237
      %v1240 = vmul.f32 %v1235, %v1238
      %v1241 = vmul.f32 %v1223, %v1134
      %v1242 = vadd.f32 %v1240, %v1241
      %vm1243 = vcmp.eq.s32.totalorder %v489, 6
      %v1244 = vsel %vm1243, 1, 0
      %1245 = vset.pattern.permute.xlu0 0
      %1246 = vperm.xlu0 %1245, %v1244
      %v1247 = vpop.permute.xlu0 %1246
      %vm1248 = vcmp.eq.s32.totalorder %v1247, 1
      %v1249 = vsel %vm1248, %v1242, %v1141
      %1251 = vrot.lane.b32.xlu0 %v1242, 96
      %v1252 = vpop.permute.xlu0 %1251
      %v1253 = vsel %vm354, %v1252, 0
      %1255 = vmatprep.subr.mxu0 0.0
      %1256 = vmatpush1.msra.mxu0 %v484
      %1257 = vmatprep.subr.mxu0 0.0
      %1258 = vmatpush1.msra.mxu0 %v485
      %1259 = vmatprep.subr.mxu0 0.0
      %1260 = vmatpush1.msra.mxu0 %v486
      %1261 = vmatprep.subr.mxu0 0.0
      %1262 = vmatpush1.msra.mxu0 %v487
      %1263 = vmatprep.subr.mxu0 0.0
      %1264 = vmatpush1.msra.mxu0 0.0
      %1265 = vmatprep.subr.mxu0 0.0
      %1266 = vmatpush1.msra.mxu0 0.0
      %1267 = vmatprep.subr.mxu0 0.0
      %1268 = vmatpush1.msra.mxu0 0.0
      %1269 = vmatprep.subr.mxu0 0.0
      %1270 = vmatpush1.msra.mxu0 0.0
      %1271 = vmatprep.subr.mxu0 0.0
      %1272 = vmatpush1.msra.mxu0 0.0
      %1273 = vmatprep.subr.mxu0 0.0
      %1274 = vmatpush1.msra.mxu0 0.0
      %1275 = vmatprep.subr.mxu0 0.0
      %1276 = vmatpush1.msra.mxu0 0.0
      %1277 = vmatprep.subr.mxu0 0.0
      %1278 = vmatpush1.msra.mxu0 0.0
      %1279 = vmatprep.subr.mxu0 0.0
      %1280 = vmatpush1.msra.mxu0 0.0
      %1281 = vmatprep.subr.mxu0 0.0
      %1282 = vmatpush1.msra.mxu0 0.0
      %1283 = vmatprep.subr.mxu0 0.0
      %1284 = vmatpush1.msra.mxu0 0.0
      %1285 = vmatprep.subr.mxu0 0.0
      %1286 = vmatpush1.msra.mxu0 0.0
      %1287 = vmatprep.subr.mxu0 0.0
      %1288 = vmatpush1.msra.mxu0 0.0
      %1289 = vmatprep.subr.mxu0 0.0
      %1290 = vmatpush1.msra.mxu0 0.0
      %1291 = vmatprep.subr.mxu0 0.0
      %1292 = vmatpush1.msra.mxu0 0.0
      %1293 = vmatprep.subr.mxu0 0.0
      %1294 = vmatpush1.msra.mxu0 0.0
      %1295 = vmatprep.subr.mxu0 0.0
      %1296 = vmatpush1.msra.mxu0 0.0
      %1297 = vmatprep.subr.mxu0 0.0
      %1298 = vmatpush1.msra.mxu0 0.0
      %1299 = vmatprep.subr.mxu0 0.0
      %1300 = vmatpush1.msra.mxu0 0.0
      %1301 = vmatprep.subr.mxu0 0.0
      %1302 = vmatpush1.msra.mxu0 0.0
      %1303 = vmatprep.subr.mxu0 0.0
      %1304 = vmatpush1.msra.mxu0 0.0
      %1305 = vmatprep.subr.mxu0 0.0
      %1306 = vmatpush1.msra.mxu0 0.0
      %1307 = vmatprep.subr.mxu0 0.0
      %1308 = vmatpush1.msra.mxu0 0.0
      %1309 = vmatprep.subr.mxu0 0.0
      %1310 = vmatpush1.msra.mxu0 0.0
      %1311 = vmatprep.subr.mxu0 0.0
      %1312 = vmatpush1.msra.mxu0 0.0
      %1313 = vmatprep.subr.mxu0 0.0
      %1314 = vmatpush1.msra.mxu0 0.0
      %1315 = vmatprep.subr.mxu0 0.0
      %1316 = vmatpush1.msra.mxu0 0.0
      %1317 = vmatprep.subr.mxu0 0.0
      %1318 = vmatpush1.msra.mxu0 0.0
      %1319 = vmatprep.mubr.f32.mxu0 0.0
      %1320 = vmatmul.mubr.f32.gmra.mrb[0].mxu0 %v1253
      %v1321 = vpop.f32.mrb[0].mxu0
      %v1322 = vadd.f32 %v494, %v1321
      %v1323 = vpop.f32.mrb[0].mxu0
      %1324 = vdwg.mxu0
      %v1325 = vadd.f32 %v481, %v1322
      %v1326 = vxor.u32 %v1325, 2147483648
      %v1327 = vmul.f32 %v1326, 1.442695
      %v1328 = vpow.pop %v1327
      %v1329 = vadd.f32 %v1328, 1.0
      %v1330 = vrcp.pop %v1329
      %v1331 = vmul.f32 1.0, %v1330
      %1333 = vrot.lane.b32.xlu0 %v1322, 64
      %v1334 = vpop.permute.xlu0 %1333
      %v1336 = vmul.f32 %v1331, %v1334
      %1338 = vrot.lane.b32.xlu0 %v1336, 64
      %v1339 = vpop.permute.xlu0 %1338
      %v1341 = vadd.f32 %v481, %v1339
      %v1342 = vtanh.pop %v1341
      %v1343 = vsub.f32 1.0, %v1331
      %1345 = vrot.lane.b32.xlu0 %v1342, 96
      %v1346 = vpop.permute.xlu0 %1345
      %v1348 = vmul.f32 %v1343, %v1346
      %v1349 = vmul.f32 %v1331, %v1242
      %v1350 = vadd.f32 %v1348, %v1349
      %vm1351 = vcmp.eq.s32.totalorder %v489, 7
      %v1352 = vsel %vm1351, 1, 0
      %1353 = vset.pattern.permute.xlu0 0
      %1354 = vperm.xlu0 %1353, %v1352
      %v1355 = vpop.permute.xlu0 %1354
      %vm1356 = vcmp.eq.s32.totalorder %v1355, 1
      %v1357 = vsel %vm1356, %v1350, %v1249
      %1359 = vrot.lane.b32.xlu0 %v1357, 96
      %v1360 = vpop.permute.xlu0 %1359
      %1362 = vst.msk [vmem:[%s334] sm:$0xff] %vm354, %v1360
      %p1363 = scmp.lt.s32.totalorder %s17, 1
      %s1364 = scalar_select %p1363, %s17, 1
      %s1365 = smul.addr %s1364, 8
      %s1366 = scalar_lea.vmem %s6, %s1365
      // Predicated region
      $region45: #{_itemnn_core.1} parent=43 // pred_check
        %p1367 = pneg %p191
      $region46: #{_itemnn_core.1} parent=43 // pred_check_branch
        %1369 = sbr.rel (%p1367) target = $region48
      $region47: #{_itemnn_core.1} parent=43 // pred_region
        _
      $region48: #{_itemnn_core.1} parent=43 // pred_fallthru
        _
    $region44: #{_itemnn_core.1} parent=5 // pred_fallthru
      _
    %p1370 = scmp.le.s32.totalorder 2, %s12
    // Predicated region
    $region49: #{_itemnn_core.1} parent=5 // pred_check
      %p1371 = pneg %p1370
    $region50: #{_itemnn_core.1} parent=5 // pred_check_branch
      %1373 = sbr.rel (%p1371) target = $region52
    $region51: #{_itemnn_core.1} parent=5 // pred_region
      %s1374 = ssub.s32 %s12, 2
      // Predicated region
      $region53: #{_itemnn_core.1} parent=51 // pred_check
        %p1375 = pneg %p197
      $region54: #{_itemnn_core.1} parent=51 // pred_check_branch
        %1377 = sbr.rel (%p1375) target = $region56
      $region55: #{_itemnn_core.1} parent=51 // pred_region
        %p1378 = scmp.lt.s32.totalorder %s18, 1
        %s1379 = scalar_select %p1378, %s18, 1
        %s1380 = smul.addr %s1379, 8
        %s1381 = scalar_lea.vmem %s6, %s1380
      $region56: #{_itemnn_core.1} parent=51 // pred_fallthru
        _
    $region52: #{_itemnn_core.1} parent=5 // pred_fallthru
      _
  $region6: #{_itemnn_core.1} parent=0 // loop_footer
    %s16 = sadd.s32 1, %s12
  $region7: #{_itemnn_core.1} parent=0 // loop_footer_branch
    %11 = sbr.rel target = $region3
  $region8: #{_itemnn_core.1} parent=0 // loop_exit
    _

</llo_original>
